<compile_context>
chip_gen: v7x
topology: tpu7x:2x2x1
jax: 0.10.0
libtpu: 0.0.40
codegen_flags: <defaults>
</compile_context>

<pallas_src>
import functools

import jax
import jax.numpy as jnp
from jax.experimental import pallas as pl
from jax.experimental.pallas import tpu as pltpu


# ----------------------------- head relayout helpers -----------------------------

if hasattr(pltpu, "einshape"):
    def _split_heads(x, S, H, dk):          # (S, H*dk) -> (H, S, dk)
        return pltpu.einshape("shd->hsd", x.reshape(S, H, dk))

    def _merge_heads(x, S, H, dk):          # (H, S, dk) -> (S, H*dk)
        return pltpu.einshape("hsd->shd", x).reshape(S, H * dk)
else:                                        # fallback for jax versions without pltpu.einshape
    def _split_heads(x, S, H, dk):
        return jnp.transpose(x.reshape(S, H, dk), (1, 0, 2))

    def _merge_heads(x, S, H, dk):
        return jnp.transpose(x, (1, 0, 2)).reshape(S, H * dk)


# ----------------------------- encoder kernel (grid = batch x layers) -----------------------------

def _encoder_layer_kernel(emb_ref, pos_bias_ref, mask_ref,
                          ln1_ref, wqkv_ref, wo_ref, ln2_ref, wi_ref, woff_ref,
                          fln_ref, y_ref, x_ref, *, S, H, dk):
    bf16 = jnp.bfloat16
    inner = H * dk
    l = pl.program_id(1)                    # layer index ("arbitrary" grid axis)

    def rms(v, w):
        # T5 LayerNorm == RMSNorm (no mean subtraction / bias), eps = 1e-6; stats in f32.
        var = jnp.mean(v * v, axis=-1, keepdims=True)
        return v * jax.lax.rsqrt(var + 1e-6) * w

    @pl.when(l == 0)
    def _():                                 # load this example's embeddings into the persistent scratch
        x_ref[...] = emb_ref[0]              # (S, d) f32

    x = x_ref[...]

    # ---- self-attention sublayer (pre-norm, residual) ----
    xn = rms(x, ln1_ref[0])
    qkv = jnp.dot(xn.astype(bf16), wqkv_ref[0],
                  preferred_element_type=jnp.float32)                  # fused QKV: (S, 3*inner)
    q = _split_heads(qkv[:, :inner].astype(bf16), S, H, dk)            # (H, S, dk)
    k = _split_heads(qkv[:, inner:2 * inner].astype(bf16), S, H, dk)
    v = _split_heads(qkv[:, 2 * inner:].astype(bf16), S, H, dk)
    # T5 does not scale scores; heads are the leading MXU batch dim (one batched contraction).
    s = jnp.einsum('hqd,hkd->hqk', q, k,
                   preferred_element_type=jnp.float32)                 # (H, S, S) f32
    s = s + pos_bias_ref[...].astype(jnp.float32) + mask_ref[0]        # bias + additive mask
    s = s - jnp.max(s, axis=-1, keepdims=True)
    p = jnp.exp(s)
    p = p * pl.reciprocal(jnp.sum(p, axis=-1, keepdims=True), approx=True)
    o = jnp.einsum('hqk,hkd->hqd', p.astype(bf16), v,
                   preferred_element_type=jnp.float32)                 # (H, S, dk) f32
    a = _merge_heads(o, S, H, dk)                                      # (S, inner)
    x = x + jnp.dot(a.astype(bf16), wo_ref[0],
                    preferred_element_type=jnp.float32)

    # ---- feed-forward sublayer: relu(x @ wi) @ wo_ff (no biases) ----
    xn = rms(x, ln2_ref[0])
    h = jnp.dot(xn.astype(bf16), wi_ref[0], preferred_element_type=jnp.float32)
    h = jnp.maximum(h, 0.0)
    x = x + jnp.dot(h.astype(bf16), woff_ref[0], preferred_element_type=jnp.float32)
    x_ref[...] = x

    @pl.when(l == pl.num_programs(1) - 1)
    def _():
        # final RMSNorm -> encoder_last_hidden_state; y = enc.sum(seq) for this example
        xe = rms(x, fln_ref[...])                                      # (S, d)
        y_ref[0] = jnp.sum(xe, axis=0, keepdims=True)                  # (1, d)


# ----------------------------- BatchNorm + regressor micro-kernel -----------------------------

def _bn_regressor_kernel(y_ref, gamma_ref, beta_ref, regw_ref, regb_ref, out_ref):
    y = y_ref[...]                                                     # (B, d) f32
    # BatchNorm1d, training-mode batch statistics (biased variance), eps = 1e-5.
    mean = jnp.mean(y, axis=0, keepdims=True)
    var = jnp.mean((y - mean) ** 2, axis=0, keepdims=True)
    yn = (y - mean) * jax.lax.rsqrt(var + 1e-5)
    yn = yn * gamma_ref[...] + beta_ref[...]
    # Linear(d, 1) as a VPU lane reduction (avoids an N=1 MXU matmul); bias read from SMEM.
    out_ref[...] = jnp.sum(yn * regw_ref[...], axis=-1, keepdims=True) + regb_ref[0, 0]


# ------------------------------ glue (plain JAX) ------------------------------

def relative_position_bucket(rel_pos, num_buckets, max_distance):
    # Bidirectional (encoder) bucketing, as in HF T5.
    num_buckets //= 2
    ret = (rel_pos > 0).astype(jnp.int32) * num_buckets
    n = jnp.abs(rel_pos)
    max_exact = num_buckets // 2
    is_small = n < max_exact
    n_safe = jnp.maximum(n, 1).astype(jnp.float32)
    val_if_large = max_exact + (
        jnp.log(n_safe / max_exact) / jnp.log(max_distance / max_exact)
        * (num_buckets - max_exact)
    ).astype(jnp.int32)
    val_if_large = jnp.minimum(val_if_large, num_buckets - 1)
    return ret + jnp.where(is_small, n, val_if_large)


def compute_position_bias(rel_emb, S, cfg):
    ctx = jnp.arange(S)[:, None]
    mem = jnp.arange(S)[None, :]
    buckets = relative_position_bucket(mem - ctx,
                                       cfg["rel_buckets"], cfg["rel_max_dist"])  # (S,S)
    values = rel_emb[buckets]                                                    # (S,S,H)
    return jnp.transpose(values, (2, 0, 1))                                      # (H,S,S)


def _derive_vmem_limit_bytes(S, d, H, dk, F):
    """Per-grid-step VMEM footprint estimate (streamed weight blocks are double-buffered)."""
    inner = H * dk
    bf, f4 = 2, 4
    streamed = 2 * (d * 3 * inner * bf + inner * d * bf + d * F * bf + F * d * bf
                    + 2 * d * f4)                         # wqkv, wo, wi, wo_ff, ln1, ln2
    resident = (2 * S * d * f4                            # emb block (double buffered)
                + H * S * S * bf                          # relative-position bias (bf16)
                + 2 * S * f4 + 2 * d * f4                 # mask, final_ln + output block
                + S * d * f4)                             # persistent activation scratch
    temps = (S * 3 * inner * (f4 + bf)                    # qkv (+ bf16 copies)
             + 3 * H * S * dk * (f4 + bf)                 # head-major q/k/v
             + 3 * H * S * S * f4                         # scores / probs / bias add
             + S * F * f4 + 6 * S * d * f4)               # ffn hidden, residual temporaries
    est = streamed + resident + temps
    try:
        cap = pltpu.get_tpu_info().vmem_capacity_bytes
    except Exception:
        cap = 64 * 1024 * 1024
    return int(min(0.9 * cap, max(8 * 1024 * 1024, 2 * est)))


def custom_t5_forward(params, ids, attention_mask, cfg):
    B, S = ids.shape
    d, H, dk = cfg["d_model"], cfg["num_heads"], cfg["d_kv"]
    F, L = cfg["d_ff"], cfg["num_layers"]
    inner = H * dk
    bf16 = jnp.bfloat16

    # Plain-JAX preprocessing: token-embedding gather and relative-position bucketing
    # (data-dependent gathers; no clean in-kernel equivalent without a manual DMA gather).
    emb = params["embed"][ids]                                                    # (B,S,d) f32
    pos_bias = compute_position_bias(params["rel_bias"], S, cfg).astype(bf16)     # (H,S,S) bf16
    mask_bias = ((1.0 - attention_mask.astype(jnp.float32)) * -1e9).reshape(B, 1, S)

    enc_kernel = functools.partial(_encoder_layer_kernel, S=S, H=H, dk=dk)

    # Encoder: grid = (batch tiles ["parallel" -> v7x 2 TCs], layers ["arbitrary", streamed weights]).
    y = pl.pallas_call(
        enc_kernel,
        out_shape=jax.ShapeDtypeStruct((B, 1, d), jnp.float32),
        grid=(B, L),
        in_specs=[
            pl.BlockSpec((1, S, d), lambda b, l: (b, 0, 0)),                  # embeddings (per example)
            pl.BlockSpec((H, S, S), lambda b, l: (0, 0, 0)),                  # position bias (resident)
            pl.BlockSpec((1, 1, S), lambda b, l: (b, 0, 0)),                  # additive mask
            pl.BlockSpec((1, 1, d), lambda b, l: (l, 0, 0)),                  # ln1    (streamed / layer)
            pl.BlockSpec((1, d, 3 * inner), lambda b, l: (l, 0, 0)),          # wqkv   (streamed / layer)
            pl.BlockSpec((1, inner, d), lambda b, l: (l, 0, 0)),              # wo     (streamed / layer)
            pl.BlockSpec((1, 1, d), lambda b, l: (l, 0, 0)),                  # ln2    (streamed / layer)
            pl.BlockSpec((1, d, F), lambda b, l: (l, 0, 0)),                  # wi     (streamed / layer)
            pl.BlockSpec((1, F, d), lambda b, l: (l, 0, 0)),                  # wo_ff  (streamed / layer)
            pl.BlockSpec((1, d), lambda b, l: (0, 0)),                        # final layernorm
        ],
        out_specs=pl.BlockSpec((1, 1, d), lambda b, l: (b, 0, 0)),
        scratch_shapes=[pltpu.VMEM((S, d), jnp.float32)],                     # persistent activation x
        compiler_params=pltpu.CompilerParams(
            dimension_semantics=("parallel", "arbitrary"),
            vmem_limit_bytes=_derive_vmem_limit_bytes(S, d, H, dk, F)),
    )(emb, pos_bias, mask_bias,
      params["ln1"], params["wqkv"], params["wo"],
      params["ln2"], params["wi"], params["wo_ff"],
      params["final_ln"]).reshape(B, d)

    # Cross-batch tail (full-batch BatchNorm statistics + regressor) as a tiny second kernel.
    def full(shape):
        return pl.BlockSpec(shape, lambda: (0,) * len(shape))

    return pl.pallas_call(
        _bn_regressor_kernel,
        out_shape=jax.ShapeDtypeStruct((B, 1), jnp.float32),
        in_specs=[full((B, d)), full((1, d)), full((1, d)), full((1, d)),
                  pl.BlockSpec(memory_space=pltpu.MemorySpace.SMEM)],         # reg_b scalar in SMEM
        out_specs=full((B, 1)),
    )(y, params["bn_gamma"], params["bn_beta"], params["reg_w"], params["reg_b"])


# ------------------------------ parameter init ------------------------------

def init_params(key, cfg):
    d, H, dk, F = cfg["d_model"], cfg["num_heads"], cfg["d_kv"], cfg["d_ff"]
    inner = H * dk
    L = cfg["num_layers"]
    keys = iter(jax.random.split(key, 3 + 6 * L))

    def nrm(shape, scale=0.05):
        return jax.random.normal(next(keys), shape, jnp.float32) * scale

    params = {
        "embed": nrm((cfg["vocab"], d), 0.1),
        "rel_bias": nrm((cfg["rel_buckets"], H), 0.1),
        "final_ln": jnp.ones((1, d), jnp.float32),
        # BatchNorm1d defaults: gamma=1, beta=0
        "bn_gamma": jnp.ones((1, d), jnp.float32),
        "bn_beta": jnp.zeros((1, d), jnp.float32),
        "reg_w": nrm((1, d), 0.1),
        "reg_b": jnp.zeros((1, 1), jnp.float32),
        "ln1": jnp.ones((L, 1, d), jnp.float32),
        "ln2": jnp.ones((L, 1, d), jnp.float32),
    }
    wqkv, wo, wi, woff = [], [], [], []
    for _ in range(L):
        wqkv.append(jnp.concatenate(
            [nrm((d, inner)), nrm((d, inner)), nrm((d, inner))], axis=1))        # [wq|wk|wv]
        wo.append(nrm((inner, d)))
        wi.append(nrm((d, F)))
        woff.append(nrm((F, d)))
    # Projection weights are stored in bf16 ONCE at init (they only feed the MXU); everything that
    # feeds element-wise / statistics math stays f32.
    params["wqkv"] = jnp.stack(wqkv).astype(jnp.bfloat16)    # (L, d, 3*inner)
    params["wo"] = jnp.stack(wo).astype(jnp.bfloat16)        # (L, inner, d)
    params["wi"] = jnp.stack(wi).astype(jnp.bfloat16)        # (L, d, F)
    params["wo_ff"] = jnp.stack(woff).astype(jnp.bfloat16)   # (L, F, d)
    return params


# ------------------------------ main ------------------------------

if __name__ == "__main__":
    cfg = dict(vocab=64, d_model=32, num_heads=4, d_kv=8, d_ff=64,
               num_layers=2, rel_buckets=8, rel_max_dist=16)
    B, S = 2, 8

    key = jax.random.PRNGKey(0)
    k_param, k_ids = jax.random.split(key)
    params = init_params(k_param, cfg)

    ids = jax.random.randint(k_ids, (B, S), 0, cfg["vocab"], dtype=jnp.int32)
    attention_mask = jnp.ones((B, S), jnp.int32).at[1, 6:].set(0)   # second example padded

    out = custom_t5_forward(params, ids, attention_mask, cfg)
    out = jax.block_until_ready(out)
    assert out.shape == (B, 1) and out.dtype == jnp.float32
    print("KERNEL_OK")
</pallas_src>

<mosaic_0001>
module attributes {stable_mosaic.version = 11 : i64} {
  func.func @_encoder_layer_kernel(%arg0: i32, %arg1: i32, %arg2: memref<1x8x32xf32, #tpu.memory_space<vmem>>, %arg3: memref<4x8x8xbf16, #tpu.memory_space<vmem>>, %arg4: memref<1x1x8xf32, #tpu.memory_space<vmem>>, %arg5: memref<1x1x32xf32, #tpu.memory_space<vmem>>, %arg6: memref<1x32x96xbf16, #tpu.memory_space<vmem>>, %arg7: memref<1x32x32xbf16, #tpu.memory_space<vmem>>, %arg8: memref<1x1x32xf32, #tpu.memory_space<vmem>>, %arg9: memref<1x32x64xbf16, #tpu.memory_space<vmem>>, %arg10: memref<1x64x32xbf16, #tpu.memory_space<vmem>>, %arg11: memref<1x32xf32, #tpu.memory_space<vmem>>, %arg12: memref<1x1x32xf32, #tpu.memory_space<vmem>>, %arg13: memref<8x32xf32, #tpu.memory_space<vmem>>) attributes {dimension_semantics = [#tpu.dimension_semantics<parallel>, #tpu.dimension_semantics<arbitrary>], iteration_bounds = array<i64: 2, 2>, scalar_prefetch = 0 : i64, scratch_operands = 1 : i64, tpu.core_type = #tpu.core_type<tc>, window_params = [{transform_indices = @transform_0, window_bounds = array<i64: 1, 8, 32>}, {pipeline_mode = #tpu.pipeline_mode<synchronous>, transform_indices = @transform_1, window_bounds = array<i64: 4, 8, 8>}, {transform_indices = @transform_2, window_bounds = array<i64: 1, 1, 8>}, {transform_indices = @transform_3, window_bounds = array<i64: 1, 1, 32>}, {transform_indices = @transform_4, window_bounds = array<i64: 1, 32, 96>}, {transform_indices = @transform_5, window_bounds = array<i64: 1, 32, 32>}, {transform_indices = @transform_6, window_bounds = array<i64: 1, 1, 32>}, {transform_indices = @transform_7, window_bounds = array<i64: 1, 32, 64>}, {transform_indices = @transform_8, window_bounds = array<i64: 1, 64, 32>}, {pipeline_mode = #tpu.pipeline_mode<synchronous>, transform_indices = @transform_9, window_bounds = array<i64: 1, 32>}, {transform_indices = @transform_10, window_bounds = array<i64: 1, 1, 32>}]} {
    %c0_i32 = arith.constant 0 : i32
    %0 = arith.cmpi eq, %arg1, %c0_i32 : i32
    %1 = arith.extui %0 : i1 to i32
    %c0_i32_0 = arith.constant 0 : i32
    %2 = arith.cmpi ne, %1, %c0_i32_0 : i32
    scf.if %2 {
      %c0_43 = arith.constant 0 : index
      %c0_44 = arith.constant 0 : index
      %c0_45 = arith.constant 0 : index
      %91 = vector.load %arg2[%c0_43, %c0_44, %c0_45] : memref<1x8x32xf32, #tpu.memory_space<vmem>>, vector<1x8x32xf32>
      %92 = vector.shape_cast %91 : vector<1x8x32xf32> to vector<8x32xf32>
      %c0_46 = arith.constant 0 : index
      %c0_47 = arith.constant 0 : index
      %93 = vector.load %arg13[%c0_46, %c0_47] : memref<8x32xf32, #tpu.memory_space<vmem>>, vector<8x32xf32>
      tpu.vector_store %arg13[%c0_46, %c0_47], %92 {strides = array<i32>} : memref<8x32xf32, #tpu.memory_space<vmem>>, vector<8x32xf32>,
    } else {
    }
    %c0 = arith.constant 0 : index
    %c0_1 = arith.constant 0 : index
    %3 = vector.load %arg13[%c0, %c0_1] : memref<8x32xf32, #tpu.memory_space<vmem>>, vector<8x32xf32>
    %c0_2 = arith.constant 0 : index
    %c0_3 = arith.constant 0 : index
    %c0_4 = arith.constant 0 : index
    %4 = vector.load %arg5[%c0_2, %c0_3, %c0_4] : memref<1x1x32xf32, #tpu.memory_space<vmem>>, vector<1x1x32xf32>
    %5 = vector.shape_cast %4 : vector<1x1x32xf32> to vector<1x32xf32>
    %6 = arith.mulf %3, %3 : vector<8x32xf32>
    %cst = arith.constant dense<0.000000e+00> : vector<8xf32>
    %7 = vector.multi_reduction <add>, %6, %cst [1] : vector<8x32xf32> to vector<8xf32>
    %8 = vector.shape_cast %7 : vector<8xf32> to vector<8x1xf32>
    %cst_5 = arith.constant 3.200000e+01 : f32
    %9 = vector.broadcast %cst_5 : f32 to vector<8x1xf32>
    %10 = arith.divf %8, %9 : vector<8x1xf32>
    %cst_6 = arith.constant 9.99999997E-7 : f32
    %11 = vector.broadcast %cst_6 : f32 to vector<8x1xf32>
    %12 = arith.addf %10, %11 : vector<8x1xf32>
    %13 = math.rsqrt %12 : vector<8x1xf32>
    %14 = vector.broadcast %13 : vector<8x1xf32> to vector<8x32xf32>
    %15 = arith.mulf %3, %14 : vector<8x32xf32>
    %16 = vector.broadcast %5 : vector<1x32xf32> to vector<8x32xf32>
    %17 = arith.mulf %15, %16 : vector<8x32xf32>
    %18 = arith.truncf %17 : vector<8x32xf32> to vector<8x32xbf16>
    %c0_7 = arith.constant 0 : index
    %c0_8 = arith.constant 0 : index
    %c0_9 = arith.constant 0 : index
    %19 = vector.load %arg6[%c0_7, %c0_8, %c0_9] : memref<1x32x96xbf16, #tpu.memory_space<vmem>>, vector<1x32x96xbf16>
    %20 = vector.shape_cast %19 : vector<1x32x96xbf16> to vector<32x96xbf16>
    %cst_10 = arith.constant dense<0.000000e+00> : vector<8x96xf32>
    %21 = tpu.matmul %18, %20, %cst_10 {dimension_numbers = #tpu.dot_dimension_numbers<[1], [0], [0], [1], [0, 0, 1, 1], [], []>} : vector<8x32xbf16>, vector<32x96xbf16>, vector<8x96xf32> -> vector<8x96xf32>
    %22 = vector.extract_strided_slice %21 {offsets = [0, 0], sizes = [8, 32], strides = [1, 1]} : vector<8x96xf32> to vector<8x32xf32>
    %23 = arith.truncf %22 : vector<8x32xf32> to vector<8x32xbf16>
    %24 = vector.shape_cast %23 : vector<8x32xbf16> to vector<8x4x8xbf16>
    %25 = tpu.transpose %24, [1, 0, 2] : vector<8x4x8xbf16> -> vector<4x8x8xbf16>
    %26 = vector.extract_strided_slice %21 {offsets = [0, 32], sizes = [8, 32], strides = [1, 1]} : vector<8x96xf32> to vector<8x32xf32>
    %27 = arith.truncf %26 : vector<8x32xf32> to vector<8x32xbf16>
    %28 = vector.shape_cast %27 : vector<8x32xbf16> to vector<8x4x8xbf16>
    %29 = tpu.transpose %28, [1, 0, 2] : vector<8x4x8xbf16> -> vector<4x8x8xbf16>
    %30 = vector.extract_strided_slice %21 {offsets = [0, 64], sizes = [8, 32], strides = [1, 1]} : vector<8x96xf32> to vector<8x32xf32>
    %31 = arith.truncf %30 : vector<8x32xf32> to vector<8x32xbf16>
    %32 = vector.shape_cast %31 : vector<8x32xbf16> to vector<8x4x8xbf16>
    %33 = tpu.transpose %32, [1, 0, 2] : vector<8x4x8xbf16> -> vector<4x8x8xbf16>
    "tpu.trace_start"() <{level = 10 : i32, message = "hqd,hkd->hqk"}> : () -> ()
    %cst_11 = arith.constant dense<0.000000e+00> : vector<4x8x8xf32>
    %34 = tpu.matmul %25, %29, %cst_11 {dimension_numbers = #tpu.dot_dimension_numbers<[2], [2], [1], [1], [0, 0, 0, 1, 1, 1], [0], [0]>} : vector<4x8x8xbf16>, vector<4x8x8xbf16>, vector<4x8x8xf32> -> vector<4x8x8xf32>
    "tpu.trace_stop"() : () -> ()
    %c0_12 = arith.constant 0 : index
    %c0_13 = arith.constant 0 : index
    %c0_14 = arith.constant 0 : index
    %35 = vector.load %arg3[%c0_12, %c0_13, %c0_14] : memref<4x8x8xbf16, #tpu.memory_space<vmem>>, vector<4x8x8xbf16>
    %36 = arith.extf %35 : vector<4x8x8xbf16> to vector<4x8x8xf32>
    %37 = arith.addf %34, %36 : vector<4x8x8xf32>
    %c0_15 = arith.constant 0 : index
    %c0_16 = arith.constant 0 : index
    %c0_17 = arith.constant 0 : index
    %38 = vector.load %arg4[%c0_15, %c0_16, %c0_17] : memref<1x1x8xf32, #tpu.memory_space<vmem>>, vector<1x1x8xf32>
    %39 = vector.shape_cast %38 : vector<1x1x8xf32> to vector<1x8xf32>
    %40 = vector.shape_cast %39 : vector<1x8xf32> to vector<1x1x8xf32>
    %41 = vector.broadcast %40 : vector<1x1x8xf32> to vector<4x8x8xf32>
    %42 = arith.addf %37, %41 : vector<4x8x8xf32>
    %cst_18 = arith.constant dense<0xFF800000> : vector<4x8xf32>
    %43 = vector.multi_reduction <maximumf>, %42, %cst_18 [2] : vector<4x8x8xf32> to vector<4x8xf32>
    %44 = vector.shape_cast %43 : vector<4x8xf32> to vector<4x8x1xf32>
    %45 = vector.broadcast %44 : vector<4x8x1xf32> to vector<4x8x8xf32>
    %46 = arith.subf %42, %45 : vector<4x8x8xf32>
    %47 = math.exp %46 : vector<4x8x8xf32>
    %cst_19 = arith.constant dense<0.000000e+00> : vector<4x8xf32>
    %48 = vector.multi_reduction <add>, %47, %cst_19 [2] : vector<4x8x8xf32> to vector<4x8xf32>
    %49 = vector.shape_cast %48 : vector<4x8xf32> to vector<4x8x1xf32>
    %50 = tpu.reciprocal %49 {approx = true} : vector<4x8x1xf32> -> vector<4x8x1xf32>
    %51 = vector.broadcast %50 : vector<4x8x1xf32> to vector<4x8x8xf32>
    %52 = arith.mulf %47, %51 : vector<4x8x8xf32>
    %53 = arith.truncf %52 : vector<4x8x8xf32> to vector<4x8x8xbf16>
    "tpu.trace_start"() <{level = 10 : i32, message = "hqk,hkd->hqd"}> : () -> ()
    %cst_20 = arith.constant dense<0.000000e+00> : vector<4x8x8xf32>
    %54 = tpu.matmul %53, %33, %cst_20 {dimension_numbers = #tpu.dot_dimension_numbers<[2], [1], [1], [2], [0, 0, 0, 1, 1, 2], [0], [0]>} : vector<4x8x8xbf16>, vector<4x8x8xbf16>, vector<4x8x8xf32> -> vector<4x8x8xf32>
    "tpu.trace_stop"() : () -> ()
    %55 = tpu.transpose %54, [1, 0, 2] : vector<4x8x8xf32> -> vector<8x4x8xf32>
    %56 = vector.shape_cast %55 : vector<8x4x8xf32> to vector<8x32xf32>
    %57 = arith.truncf %56 : vector<8x32xf32> to vector<8x32xbf16>
    %c0_21 = arith.constant 0 : index
    %c0_22 = arith.constant 0 : index
    %c0_23 = arith.constant 0 : index
    %58 = vector.load %arg7[%c0_21, %c0_22, %c0_23] : memref<1x32x32xbf16, #tpu.memory_space<vmem>>, vector<1x32x32xbf16>
    %59 = vector.shape_cast %58 : vector<1x32x32xbf16> to vector<32x32xbf16>
    %cst_24 = arith.constant dense<0.000000e+00> : vector<8x32xf32>
    %60 = tpu.matmul %57, %59, %cst_24 {dimension_numbers = #tpu.dot_dimension_numbers<[1], [0], [0], [1], [0, 0, 1, 1], [], []>} : vector<8x32xbf16>, vector<32x32xbf16>, vector<8x32xf32> -> vector<8x32xf32>
    %61 = arith.addf %3, %60 : vector<8x32xf32>
    %c0_25 = arith.constant 0 : index
    %c0_26 = arith.constant 0 : index
    %c0_27 = arith.constant 0 : index
    %62 = vector.load %arg8[%c0_25, %c0_26, %c0_27] : memref<1x1x32xf32, #tpu.memory_space<vmem>>, vector<1x1x32xf32>
    %63 = vector.shape_cast %62 : vector<1x1x32xf32> to vector<1x32xf32>
    %64 = arith.mulf %61, %61 : vector<8x32xf32>
    %cst_28 = arith.constant dense<0.000000e+00> : vector<8xf32>
    %65 = vector.multi_reduction <add>, %64, %cst_28 [1] : vector<8x32xf32> to vector<8xf32>
    %66 = vector.shape_cast %65 : vector<8xf32> to vector<8x1xf32>
    %cst_29 = arith.constant 3.200000e+01 : f32
    %67 = vector.broadcast %cst_29 : f32 to vector<8x1xf32>
    %68 = arith.divf %66, %67 : vector<8x1xf32>
    %cst_30 = arith.constant 9.99999997E-7 : f32
    %69 = vector.broadcast %cst_30 : f32 to vector<8x1xf32>
    %70 = arith.addf %68, %69 : vector<8x1xf32>
    %71 = math.rsqrt %70 : vector<8x1xf32>
    %72 = vector.broadcast %71 : vector<8x1xf32> to vector<8x32xf32>
    %73 = arith.mulf %61, %72 : vector<8x32xf32>
    %74 = vector.broadcast %63 : vector<1x32xf32> to vector<8x32xf32>
    %75 = arith.mulf %73, %74 : vector<8x32xf32>
    %76 = arith.truncf %75 : vector<8x32xf32> to vector<8x32xbf16>
    %c0_31 = arith.constant 0 : index
    %c0_32 = arith.constant 0 : index
    %c0_33 = arith.constant 0 : index
    %77 = vector.load %arg9[%c0_31, %c0_32, %c0_33] : memref<1x32x64xbf16, #tpu.memory_space<vmem>>, vector<1x32x64xbf16>
    %78 = vector.shape_cast %77 : vector<1x32x64xbf16> to vector<32x64xbf16>
    %cst_34 = arith.constant dense<0.000000e+00> : vector<8x64xf32>
    %79 = tpu.matmul %76, %78, %cst_34 {dimension_numbers = #tpu.dot_dimension_numbers<[1], [0], [0], [1], [0, 0, 1, 1], [], []>} : vector<8x32xbf16>, vector<32x64xbf16>, vector<8x64xf32> -> vector<8x64xf32>
    %cst_35 = arith.constant 0.000000e+00 : f32
    %80 = vector.broadcast %cst_35 : f32 to vector<8x64xf32>
    %81 = arith.maximumf %79, %80 : vector<8x64xf32>
    %82 = arith.truncf %81 : vector<8x64xf32> to vector<8x64xbf16>
    %c0_36 = arith.constant 0 : index
    %c0_37 = arith.constant 0 : index
    %c0_38 = arith.constant 0 : index
    %83 = vector.load %arg10[%c0_36, %c0_37, %c0_38] : memref<1x64x32xbf16, #tpu.memory_space<vmem>>, vector<1x64x32xbf16>
    %84 = vector.shape_cast %83 : vector<1x64x32xbf16> to vector<64x32xbf16>
    %cst_39 = arith.constant dense<0.000000e+00> : vector<8x32xf32>
    %85 = tpu.matmul %82, %84, %cst_39 {dimension_numbers = #tpu.dot_dimension_numbers<[1], [0], [0], [1], [0, 0, 1, 1], [], []>} : vector<8x64xbf16>, vector<64x32xbf16>, vector<8x32xf32> -> vector<8x32xf32>
    %86 = arith.addf %61, %85 : vector<8x32xf32>
    %c0_40 = arith.constant 0 : index
    %c0_41 = arith.constant 0 : index
    %87 = vector.load %arg13[%c0_40, %c0_41] : memref<8x32xf32, #tpu.memory_space<vmem>>, vector<8x32xf32>
    tpu.vector_store %arg13[%c0_40, %c0_41], %86 {strides = array<i32>} : memref<8x32xf32, #tpu.memory_space<vmem>>, vector<8x32xf32>,
    %c1_i32 = arith.constant 1 : i32
    %88 = arith.cmpi eq, %arg1, %c1_i32 : i32
    %89 = arith.extui %88 : i1 to i32
    %c0_i32_42 = arith.constant 0 : i32
    %90 = arith.cmpi ne, %89, %c0_i32_42 : i32
    scf.if %90 {
      %c0_43 = arith.constant 0 : index
      %c0_44 = arith.constant 0 : index
      %91 = vector.load %arg11[%c0_43, %c0_44] : memref<1x32xf32, #tpu.memory_space<vmem>>, vector<1x32xf32>
      %92 = arith.mulf %86, %86 : vector<8x32xf32>
      %cst_45 = arith.constant dense<0.000000e+00> : vector<8xf32>
      %93 = vector.multi_reduction <add>, %92, %cst_45 [1] : vector<8x32xf32> to vector<8xf32>
      %94 = vector.shape_cast %93 : vector<8xf32> to vector<8x1xf32>
      %cst_46 = arith.constant 3.200000e+01 : f32
      %95 = vector.broadcast %cst_46 : f32 to vector<8x1xf32>
      %96 = arith.divf %94, %95 : vector<8x1xf32>
      %cst_47 = arith.constant 9.99999997E-7 : f32
      %97 = vector.broadcast %cst_47 : f32 to vector<8x1xf32>
      %98 = arith.addf %96, %97 : vector<8x1xf32>
      %99 = math.rsqrt %98 : vector<8x1xf32>
      %100 = vector.broadcast %99 : vector<8x1xf32> to vector<8x32xf32>
      %101 = arith.mulf %86, %100 : vector<8x32xf32>
      %102 = vector.broadcast %91 : vector<1x32xf32> to vector<8x32xf32>
      %103 = arith.mulf %101, %102 : vector<8x32xf32>
      %cst_48 = arith.constant dense<0.000000e+00> : vector<32xf32>
      %104 = vector.multi_reduction <add>, %103, %cst_48 [0] : vector<8x32xf32> to vector<32xf32>
      %105 = vector.shape_cast %104 : vector<32xf32> to vector<1x32xf32>
      %c0_49 = arith.constant 0 : index
      %c0_50 = arith.constant 0 : index
      %c0_51 = arith.constant 0 : index
      %106 = vector.load %arg12[%c0_49, %c0_50, %c0_51] : memref<1x1x32xf32, #tpu.memory_space<vmem>>, vector<1x1x32xf32>
      %107 = vector.shape_cast %106 : vector<1x1x32xf32> to vector<1x32xf32>
      %108 = vector.shape_cast %105 : vector<1x32xf32> to vector<1x1x32xf32>
      tpu.vector_store %arg12[%c0_49, %c0_50, %c0_51], %108 {strides = array<i32>} : memref<1x1x32xf32, #tpu.memory_space<vmem>>, vector<1x1x32xf32>,
    } else {
    }
    return
  }
  func.func @transform_0(%arg0: i32, %arg1: i32) -> (i32, i32, i32) {
    %c0_i32 = arith.constant 0 : i32
    %c0_i32_0 = arith.constant 0 : i32
    %c0_i32_1 = arith.constant 0 : i32
    return %arg0, %c0_i32, %c0_i32_0 : i32, i32, i32
  }
  func.func @transform_1(%arg0: i32, %arg1: i32) -> (i32, i32, i32) {
    %c0_i32 = arith.constant 0 : i32
    %c0_i32_0 = arith.constant 0 : i32
    %c0_i32_1 = arith.constant 0 : i32
    %c0_i32_2 = arith.constant 0 : i32
    return %c0_i32, %c0_i32_0, %c0_i32_1 : i32, i32, i32
  }
  func.func @transform_2(%arg0: i32, %arg1: i32) -> (i32, i32, i32) {
    %c0_i32 = arith.constant 0 : i32
    %c0_i32_0 = arith.constant 0 : i32
    %c0_i32_1 = arith.constant 0 : i32
    return %arg0, %c0_i32, %c0_i32_0 : i32, i32, i32
  }
  func.func @transform_3(%arg0: i32, %arg1: i32) -> (i32, i32, i32) {
    %c0_i32 = arith.constant 0 : i32
    %c0_i32_0 = arith.constant 0 : i32
    %c0_i32_1 = arith.constant 0 : i32
    return %arg1, %c0_i32, %c0_i32_0 : i32, i32, i32
  }
  func.func @transform_4(%arg0: i32, %arg1: i32) -> (i32, i32, i32) {
    %c0_i32 = arith.constant 0 : i32
    %c0_i32_0 = arith.constant 0 : i32
    %c0_i32_1 = arith.constant 0 : i32
    return %arg1, %c0_i32, %c0_i32_0 : i32, i32, i32
  }
  func.func @transform_5(%arg0: i32, %arg1: i32) -> (i32, i32, i32) {
    %c0_i32 = arith.constant 0 : i32
    %c0_i32_0 = arith.constant 0 : i32
    %c0_i32_1 = arith.constant 0 : i32
    return %arg1, %c0_i32, %c0_i32_0 : i32, i32, i32
  }
  func.func @transform_6(%arg0: i32, %arg1: i32) -> (i32, i32, i32) {
    %c0_i32 = arith.constant 0 : i32
    %c0_i32_0 = arith.constant 0 : i32
    %c0_i32_1 = arith.constant 0 : i32
    return %arg1, %c0_i32, %c0_i32_0 : i32, i32, i32
  }
  func.func @transform_7(%arg0: i32, %arg1: i32) -> (i32, i32, i32) {
    %c0_i32 = arith.constant 0 : i32
    %c0_i32_0 = arith.constant 0 : i32
    %c0_i32_1 = arith.constant 0 : i32
    return %arg1, %c0_i32, %c0_i32_0 : i32, i32, i32
  }
  func.func @transform_8(%arg0: i32, %arg1: i32) -> (i32, i32, i32) {
    %c0_i32 = arith.constant 0 : i32
    %c0_i32_0 = arith.constant 0 : i32
    %c0_i32_1 = arith.constant 0 : i32
    return %arg1, %c0_i32, %c0_i32_0 : i32, i32, i32
  }
  func.func @transform_9(%arg0: i32, %arg1: i32) -> (i32, i32) {
    %c0_i32 = arith.constant 0 : i32
    %c0_i32_0 = arith.constant 0 : i32
    %c0_i32_1 = arith.constant 0 : i32
    return %c0_i32, %c0_i32_0 : i32, i32
  }
  func.func @transform_10(%arg0: i32, %arg1: i32) -> (i32, i32, i32) {
    %c0_i32 = arith.constant 0 : i32
    %c0_i32_0 = arith.constant 0 : i32
    %c0_i32_1 = arith.constant 0 : i32
    return %arg0, %c0_i32, %c0_i32_0 : i32, i32, i32
  }
}

</mosaic_0001>

<llo_original>
// kernel: tpu_custom_call.1
$region0: #{tpu_custom_call.1}
  #allocation0 [shape = 'u32[]', space=smem, size = 0x4, offset = 0x4, fixed_abs, tag = 'smem constant byte address 0x4 - core index']
  #allocation1 [shape = 'u32[144,128]{1,0:T(1,128)}', space=vmem, size = 0x12000, scoped, tag = 'internal scratch']
  #allocation2 [shape = 'f32[8,32]{1,0:T(8,128)}', space=vmem, size = 0x1000, scoped, tag = 'scratch operand']
  %s0 = inlined_call_operand.hbm [shape: f32[2,8,32], index: 0, kind: input, shape index: {}]
  %s1 = inlined_call_operand.hbm [shape: bf16[4,8,8], index: 1, kind: input, shape index: {}]
  %s2 = inlined_call_operand.vmem [shape: f32[2,1,8], index: 2, kind: input, shape index: {}]
  %s3 = inlined_call_operand.vmem [shape: f32[2,1,32], index: 3, kind: input, shape index: {}]
  %s4 = inlined_call_operand.vmem [shape: bf16[2,32,96], index: 4, kind: input, shape index: {}]
  %s5 = inlined_call_operand.vmem [shape: bf16[2,32,32], index: 5, kind: input, shape index: {}]
  %s6 = inlined_call_operand.vmem [shape: f32[2,1,32], index: 6, kind: input, shape index: {}]
  %s7 = inlined_call_operand.vmem [shape: bf16[2,32,64], index: 7, kind: input, shape index: {}]
  %s8 = inlined_call_operand.vmem [shape: bf16[2,64,32], index: 8, kind: input, shape index: {}]
  %s9 = inlined_call_operand.vmem [shape: f32[1,32], index: 9, kind: input, shape index: {}]
  %s10 = inlined_call_operand.hbm [shape: f32[2,1,32], index: 10, kind: output, shape index: {}]
  %s11 = sld [smem:[#allocation0]]
  $region89: #{tpu_custom_call.1} parent=0
    _
  %s13 = ssub.s32 1, %s11
  %s14 = scalar_select 0, %s13, %s11
  $region1: #{tpu_custom_call.1} parent=0
    #allocation3 [shape = 'u8[8192]{0}', space=vmem, size = 0x2000, scoped, tag = 'input window, operand 0']
    #allocation4 [shape = 's32[2]{0}', space=sflag, size = 0x8, scoped, tag = 'scoped memory for tpu_custom_call.1']
    #allocation5 [shape = 's32[2]{0}', space=sflag, size = 0x8, scoped, tag = 'scoped memory for tpu_custom_call.1']
    #allocation6 [shape = 'u8[8192]{0}', space=vmem, size = 0x2000, scoped, tag = 'input window, operand 1, single buffered']
    #allocation7 [shape = 's32[1]{0}', space=sflag, size = 0x4, scoped, tag = 'scoped memory for tpu_custom_call.1']
    #allocation8 [shape = 'u8[1024]{0}', space=vmem, size = 0x400, scoped, tag = 'output window, operand 0']
    %15 = vsyncpa [#allocation4], 0
    %s16 = scalar_lea.sflag [#allocation4], 1
    %17 = vsyncpa %s16, 0
    %18 = vsyncpa [#allocation7], 0
    %19 = vsyncpa [#allocation5], 0
    %s20 = scalar_lea.sflag [#allocation5], 1
    %21 = vsyncpa %s20, 0
    loop: start=0, step=1, limit=6
    $region2: #{tpu_custom_call.1} parent=1 // loop_pre_header
      _
    $region3: #{tpu_custom_call.1} parent=1 // loop_header
      %s23 = sphi 0, %s27
      %p24 = scmp.ge.s32.totalorder %s23, 6
      %s30 = sphi 0, %s42
      %s31 = sphi 0, %s38
      %s32 = sphi 0, %s30
      %s33 = sphi 0, %s31
      %s34 = sphi 0, %s32
      %s35 = sphi 0, %s33
      %s45 = sphi 0, %s47
      %s48 = sphi 0, %s45
      %s49 = sphi 0, %s48
      %s65 = sphi 0, %s49
      %s69 = sphi 0, %s69
      %s71 = sphi 0, %s69
      %s72 = sphi 0, %s71
      %s86 = sphi 0, %s72
      %s92 = sphi 0, %s94
      %s95 = sphi 0, %s92
      %s96 = sphi 0, %s95
      %s112 = sphi 0, %s96
      %s118 = sphi 0, %s120
      %s121 = sphi 0, %s118
      %s122 = sphi 0, %s121
      %s138 = sphi 0, %s122
      %s144 = sphi 0, %s146
      %s147 = sphi 0, %s144
      %s148 = sphi 0, %s147
      %s164 = sphi 0, %s148
      %s170 = sphi 0, %s172
      %s173 = sphi 0, %s170
      %s174 = sphi 0, %s173
      %s190 = sphi 0, %s174
      %s196 = sphi 0, %s198
      %s199 = sphi 0, %s196
      %s200 = sphi 0, %s199
      %s216 = sphi 0, %s200
      %s222 = sphi 0, %s224
      %s225 = sphi 0, %s222
      %s226 = sphi 0, %s225
      %s242 = sphi 0, %s226
      %s248 = sphi 0, %s250
      %s251 = sphi 0, %s248
      %s252 = sphi 0, %s251
      %s268 = sphi 0, %s252
      %s272 = sphi 0, %s272
      %s274 = sphi 0, %s272
      %s275 = sphi 0, %s274
      %s289 = sphi 0, %s275
      %s295 = sphi 0, %s297
      %s298 = sphi 0, %s295
      %s299 = sphi 0, %s298
      %s315 = sphi 0, %s299
    $region4: #{tpu_custom_call.1} parent=1 // loop_header_branch
      %26 = sbr.rel (%p24) target = $region8
    $region5: #{tpu_custom_call.1} parent=1 // loop_body
      %s28 = ssub.s32 %s23, 1
      %s29 = ssub.s32 %s23, 2
      %s36 = sadd.s32 1, %s31
      %p37 = scmp.ge.s32.totalorder %s36, 2
      %s38 = scalar_select %p37, 0, %s36
      %s39 = sadd.s32 1, %s30
      %s40 = scalar_select %p37, %s39, %s30
      %p41 = scmp.ge.s32.totalorder %s40, 2
      %s42 = scalar_select %p41, 0, %s40
      %s43 = ssub.s32 %s30, %s42
      %p44 = scmp.eq.s32.totalorder %s43, 0
      %s46 = sadd.s32 %s45, 1
      %s47 = scalar_select %p44, %s45, %s46
      %p50 = pneg %p44
      %p51 = scmp.eq.s32.totalorder %s23, 3
      %p52 = por %p50, %p51
      %p53 = scmp.ne.s32.totalorder %s45, %s48
      %p54 = scmp.eq.s32.totalorder %s23, 0
      %p55 = por %p53, %p54
      %p56 = scmp.ne.s32.totalorder %s45, %s48
      %p57 = scmp.eq.s32.totalorder %s28, 3
      %p58 = por %p56, %p57
      %p59 = scmp.ne.s32.totalorder %s48, %s49
      %p60 = scmp.eq.s32.totalorder %s28, 0
      %p61 = por %p59, %p60
      %p62 = scmp.ne.s32.totalorder %s48, %s49
      %p63 = scmp.eq.s32.totalorder %s29, 3
      %p64 = por %p62, %p63
      %p66 = scmp.ne.s32.totalorder %s49, %s65
      %p67 = scmp.eq.s32.totalorder %s29, 0
      %p68 = por %p66, %p67
      %s70 = sadd.s32 %s69, 1
      %p73 = scmp.eq.s32.totalorder %s23, 3
      %p74 = scmp.ne.s32.totalorder %s69, %s71
      %p75 = scmp.eq.s32.totalorder %s23, 0
      %p76 = por %p74, %p75
      %p77 = scmp.ne.s32.totalorder %s69, %s71
      %p78 = scmp.eq.s32.totalorder %s28, 3
      %p79 = por %p77, %p78
      %p80 = scmp.ne.s32.totalorder %s71, %s72
      %p81 = scmp.eq.s32.totalorder %s28, 0
      %p82 = por %p80, %p81
      %p83 = scmp.ne.s32.totalorder %s71, %s72
      %p84 = scmp.eq.s32.totalorder %s29, 3
      %p85 = por %p83, %p84
      %p87 = scmp.ne.s32.totalorder %s72, %s86
      %p88 = scmp.eq.s32.totalorder %s29, 0
      %p89 = por %p87, %p88
      %s90 = ssub.s32 %s30, %s42
      %p91 = scmp.eq.s32.totalorder %s90, 0
      %s93 = sadd.s32 %s92, 1
      %s94 = scalar_select %p91, %s92, %s93
      %p97 = pneg %p91
      %p98 = scmp.eq.s32.totalorder %s23, 3
      %p99 = por %p97, %p98
      %p100 = scmp.ne.s32.totalorder %s92, %s95
      %p101 = scmp.eq.s32.totalorder %s23, 0
      %p102 = por %p100, %p101
      %p103 = scmp.ne.s32.totalorder %s92, %s95
      %p104 = scmp.eq.s32.totalorder %s28, 3
      %p105 = por %p103, %p104
      %p106 = scmp.ne.s32.totalorder %s95, %s96
      %p107 = scmp.eq.s32.totalorder %s28, 0
      %p108 = por %p106, %p107
      %p109 = scmp.ne.s32.totalorder %s95, %s96
      %p110 = scmp.eq.s32.totalorder %s29, 3
      %p111 = por %p109, %p110
      %p113 = scmp.ne.s32.totalorder %s96, %s112
      %p114 = scmp.eq.s32.totalorder %s29, 0
      %p115 = por %p113, %p114
      %s116 = ssub.s32 %s31, %s38
      %p117 = scmp.eq.s32.totalorder %s116, 0
      %s119 = sadd.s32 %s118, 1
      %s120 = scalar_select %p117, %s118, %s119
      %p123 = pneg %p117
      %p124 = scmp.eq.s32.totalorder %s23, 3
      %p125 = por %p123, %p124
      %p126 = scmp.ne.s32.totalorder %s118, %s121
      %p127 = scmp.eq.s32.totalorder %s23, 0
      %p128 = por %p126, %p127
      %p129 = scmp.ne.s32.totalorder %s118, %s121
      %p130 = scmp.eq.s32.totalorder %s28, 3
      %p131 = por %p129, %p130
      %p132 = scmp.ne.s32.totalorder %s121, %s122
      %p133 = scmp.eq.s32.totalorder %s28, 0
      %p134 = por %p132, %p133
      %p135 = scmp.ne.s32.totalorder %s121, %s122
      %p136 = scmp.eq.s32.totalorder %s29, 3
      %p137 = por %p135, %p136
      %p139 = scmp.ne.s32.totalorder %s122, %s138
      %p140 = scmp.eq.s32.totalorder %s29, 0
      %p141 = por %p139, %p140
      %s142 = ssub.s32 %s31, %s38
      %p143 = scmp.eq.s32.totalorder %s142, 0
      %s145 = sadd.s32 %s144, 1
      %s146 = scalar_select %p143, %s144, %s145
      %p149 = pneg %p143
      %p150 = scmp.eq.s32.totalorder %s23, 3
      %p151 = por %p149, %p150
      %p152 = scmp.ne.s32.totalorder %s144, %s147
      %p153 = scmp.eq.s32.totalorder %s23, 0
      %p154 = por %p152, %p153
      %p155 = scmp.ne.s32.totalorder %s144, %s147
      %p156 = scmp.eq.s32.totalorder %s28, 3
      %p157 = por %p155, %p156
      %p158 = scmp.ne.s32.totalorder %s147, %s148
      %p159 = scmp.eq.s32.totalorder %s28, 0
      %p160 = por %p158, %p159
      %p161 = scmp.ne.s32.totalorder %s147, %s148
      %p162 = scmp.eq.s32.totalorder %s29, 3
      %p163 = por %p161, %p162
      %p165 = scmp.ne.s32.totalorder %s148, %s164
      %p166 = scmp.eq.s32.totalorder %s29, 0
      %p167 = por %p165, %p166
      %s168 = ssub.s32 %s31, %s38
      %p169 = scmp.eq.s32.totalorder %s168, 0
      %s171 = sadd.s32 %s170, 1
      %s172 = scalar_select %p169, %s170, %s171
      %p175 = pneg %p169
      %p176 = scmp.eq.s32.totalorder %s23, 3
      %p177 = por %p175, %p176
      %p178 = scmp.ne.s32.totalorder %s170, %s173
      %p179 = scmp.eq.s32.totalorder %s23, 0
      %p180 = por %p178, %p179
      %p181 = scmp.ne.s32.totalorder %s170, %s173
      %p182 = scmp.eq.s32.totalorder %s28, 3
      %p183 = por %p181, %p182
      %p184 = scmp.ne.s32.totalorder %s173, %s174
      %p185 = scmp.eq.s32.totalorder %s28, 0
      %p186 = por %p184, %p185
      %p187 = scmp.ne.s32.totalorder %s173, %s174
      %p188 = scmp.eq.s32.totalorder %s29, 3
      %p189 = por %p187, %p188
      %p191 = scmp.ne.s32.totalorder %s174, %s190
      %p192 = scmp.eq.s32.totalorder %s29, 0
      %p193 = por %p191, %p192
      %s194 = ssub.s32 %s31, %s38
      %p195 = scmp.eq.s32.totalorder %s194, 0
      %s197 = sadd.s32 %s196, 1
      %s198 = scalar_select %p195, %s196, %s197
      %p201 = pneg %p195
      %p202 = scmp.eq.s32.totalorder %s23, 3
      %p203 = por %p201, %p202
      %p204 = scmp.ne.s32.totalorder %s196, %s199
      %p205 = scmp.eq.s32.totalorder %s23, 0
      %p206 = por %p204, %p205
      %p207 = scmp.ne.s32.totalorder %s196, %s199
      %p208 = scmp.eq.s32.totalorder %s28, 3
      %p209 = por %p207, %p208
      %p210 = scmp.ne.s32.totalorder %s199, %s200
      %p211 = scmp.eq.s32.totalorder %s28, 0
      %p212 = por %p210, %p211
      %p213 = scmp.ne.s32.totalorder %s199, %s200
      %p214 = scmp.eq.s32.totalorder %s29, 3
      %p215 = por %p213, %p214
      %p217 = scmp.ne.s32.totalorder %s200, %s216
      %p218 = scmp.eq.s32.totalorder %s29, 0
      %p219 = por %p217, %p218
      %s220 = ssub.s32 %s31, %s38
      %p221 = scmp.eq.s32.totalorder %s220, 0
      %s223 = sadd.s32 %s222, 1
      %s224 = scalar_select %p221, %s222, %s223
      %p227 = pneg %p221
      %p228 = scmp.eq.s32.totalorder %s23, 3
      %p229 = por %p227, %p228
      %p230 = scmp.ne.s32.totalorder %s222, %s225
      %p231 = scmp.eq.s32.totalorder %s23, 0
      %p232 = por %p230, %p231
      %p233 = scmp.ne.s32.totalorder %s222, %s225
      %p234 = scmp.eq.s32.totalorder %s28, 3
      %p235 = por %p233, %p234
      %p236 = scmp.ne.s32.totalorder %s225, %s226
      %p237 = scmp.eq.s32.totalorder %s28, 0
      %p238 = por %p236, %p237
      %p239 = scmp.ne.s32.totalorder %s225, %s226
      %p240 = scmp.eq.s32.totalorder %s29, 3
      %p241 = por %p239, %p240
      %p243 = scmp.ne.s32.totalorder %s226, %s242
      %p244 = scmp.eq.s32.totalorder %s29, 0
      %p245 = por %p243, %p244
      %s246 = ssub.s32 %s31, %s38
      %p247 = scmp.eq.s32.totalorder %s246, 0
      %s249 = sadd.s32 %s248, 1
      %s250 = scalar_select %p247, %s248, %s249
      %p253 = pneg %p247
      %p254 = scmp.eq.s32.totalorder %s23, 3
      %p255 = por %p253, %p254
      %p256 = scmp.ne.s32.totalorder %s248, %s251
      %p257 = scmp.eq.s32.totalorder %s23, 0
      %p258 = por %p256, %p257
      %p259 = scmp.ne.s32.totalorder %s248, %s251
      %p260 = scmp.eq.s32.totalorder %s28, 3
      %p261 = por %p259, %p260
      %p262 = scmp.ne.s32.totalorder %s251, %s252
      %p263 = scmp.eq.s32.totalorder %s28, 0
      %p264 = por %p262, %p263
      %p265 = scmp.ne.s32.totalorder %s251, %s252
      %p266 = scmp.eq.s32.totalorder %s29, 3
      %p267 = por %p265, %p266
      %p269 = scmp.ne.s32.totalorder %s252, %s268
      %p270 = scmp.eq.s32.totalorder %s29, 0
      %p271 = por %p269, %p270
      %s273 = sadd.s32 %s272, 1
      %p276 = scmp.eq.s32.totalorder %s23, 3
      %p277 = scmp.ne.s32.totalorder %s272, %s274
      %p278 = scmp.eq.s32.totalorder %s23, 0
      %p279 = por %p277, %p278
      %p280 = scmp.ne.s32.totalorder %s272, %s274
      %p281 = scmp.eq.s32.totalorder %s28, 3
      %p282 = por %p280, %p281
      %p283 = scmp.ne.s32.totalorder %s274, %s275
      %p284 = scmp.eq.s32.totalorder %s28, 0
      %p285 = por %p283, %p284
      %p286 = scmp.ne.s32.totalorder %s274, %s275
      %p287 = scmp.eq.s32.totalorder %s29, 3
      %p288 = por %p286, %p287
      %p290 = scmp.ne.s32.totalorder %s275, %s289
      %p291 = scmp.eq.s32.totalorder %s29, 0
      %p292 = por %p290, %p291
      %s293 = ssub.s32 %s30, %s42
      %p294 = scmp.eq.s32.totalorder %s293, 0
      %s296 = sadd.s32 %s295, 1
      %s297 = scalar_select %p294, %s295, %s296
      %p300 = pneg %p294
      %p301 = scmp.eq.s32.totalorder %s23, 3
      %p302 = por %p300, %p301
      %p303 = scmp.ne.s32.totalorder %s295, %s298
      %p304 = scmp.eq.s32.totalorder %s23, 0
      %p305 = por %p303, %p304
      %p306 = scmp.ne.s32.totalorder %s295, %s298
      %p307 = scmp.eq.s32.totalorder %s28, 3
      %p308 = por %p306, %p307
      %p309 = scmp.ne.s32.totalorder %s298, %s299
      %p310 = scmp.eq.s32.totalorder %s28, 0
      %p311 = por %p309, %p310
      %p312 = scmp.ne.s32.totalorder %s298, %s299
      %p313 = scmp.eq.s32.totalorder %s29, 3
      %p314 = por %p312, %p313
      %p316 = scmp.ne.s32.totalorder %s299, %s315
      %p317 = scmp.eq.s32.totalorder %s29, 0
      %p318 = por %p316, %p317
      %p319 = scmp.le.s32.totalorder 1, %s23
      %p320 = scmp.lt.s32.totalorder %s23, 5
      %p321 = pnand %p319, %p320
      %p322 = pneg %p321
      // Predicated region
      $region9: #{tpu_custom_call.1} parent=5 // pred_check
        _
      $region10: #{tpu_custom_call.1} parent=5 // pred_check_branch
        %324 = sbr.rel (%p321) target = $region12
      $region11: #{tpu_custom_call.1} parent=5 // pred_region
        %s325 = ssub.s32 %s23, 1
        // Predicated region
        $region13: #{tpu_custom_call.1} parent=11 // pred_check
          %p326 = pneg %p82
        $region14: #{tpu_custom_call.1} parent=11 // pred_check_branch
          %328 = sbr.rel (%p326) target = $region16
        $region15: #{tpu_custom_call.1} parent=11 // pred_region
          %s330 = ssub.s32 256, 256
          %331 = vsyncadd [#allocation7], %s330
          %s332 = sshll.u32 [#allocation6], 4
          %s333 = int_to_ptr.vmem [resolvable:$true] %s332
          %338 = dma.hbm_to_vmem [thread:$0]  %s1, 256, %s333, [#allocation7], 64, 64, 4
        $region16: #{tpu_custom_call.1} parent=11 // pred_fallthru
          _
        // Predicated region
        $region17: #{tpu_custom_call.1} parent=11 // pred_check
          %p339 = pneg %p285
        $region18: #{tpu_custom_call.1} parent=11 // pred_check_branch
          %341 = sbr.rel (%p339) target = $region20
        $region19: #{tpu_custom_call.1} parent=11 // pred_region
          _
        $region20: #{tpu_custom_call.1} parent=11 // pred_fallthru
          _
      $region12: #{tpu_custom_call.1} parent=5 // pred_fallthru
        _
      %p342 = scmp.lt.s32.totalorder %s23, 4
      // Predicated region
      $region21: #{tpu_custom_call.1} parent=5 // pred_check
        %p343 = pneg %p342
      $region22: #{tpu_custom_call.1} parent=5 // pred_check_branch
        %345 = sbr.rel (%p343) target = $region24
      $region23: #{tpu_custom_call.1} parent=5 // pred_region
        // Predicated region
        $region25: #{tpu_custom_call.1} parent=23 // pred_check
          %p346 = pneg %p55
        $region26: #{tpu_custom_call.1} parent=23 // pred_check_branch
          %348 = sbr.rel (%p346) target = $region28
        $region27: #{tpu_custom_call.1} parent=23 // pred_region
          %s349 = sand.u32 %s45, 1
          %s350 = scalar_lea.sflag [#allocation4], %s349
          %s351 = sand.u32 %s45, 1
          %s352 = smul.addr %s351, 8
          %s353 = scalar_lea.vmem [#allocation3], %s352
          %s355 = ssub.s32 128, 128
          %356 = vsyncadd %s350, %s355
          %s357 = smul.addr %s30, 128
          %s358 = scalar_lea.hbm %s0, %s357
          %s360 = sshll.u32 %s353, 4
          %s361 = int_to_ptr.vmem [resolvable:$true] %s360
          %363 = dma.hbm_to_vmem [thread:$0]  %s358, 128, %s361, %s350
        $region28: #{tpu_custom_call.1} parent=23 // pred_fallthru
          _
        // Predicated region
        $region29: #{tpu_custom_call.1} parent=23 // pred_check
          %p364 = pneg %p102
        $region30: #{tpu_custom_call.1} parent=23 // pred_check_branch
          %366 = sbr.rel (%p364) target = $region32
        $region31: #{tpu_custom_call.1} parent=23 // pred_region
          %p367 = scmp.lt.s32.totalorder %s30, 1
          %s368 = scalar_select %p367, %s30, 1
          %s369 = scalar_lea.vmem %s2, %s368
        $region32: #{tpu_custom_call.1} parent=23 // pred_fallthru
          _
        // Predicated region
        $region33: #{tpu_custom_call.1} parent=23 // pred_check
          %p370 = pneg %p128
        $region34: #{tpu_custom_call.1} parent=23 // pred_check_branch
          %372 = sbr.rel (%p370) target = $region36
        $region35: #{tpu_custom_call.1} parent=23 // pred_region
          %p373 = scmp.lt.s32.totalorder %s31, 1
          %s374 = scalar_select %p373, %s31, 1
          %s375 = scalar_lea.vmem %s3, %s374
        $region36: #{tpu_custom_call.1} parent=23 // pred_fallthru
          _
        // Predicated region
        $region37: #{tpu_custom_call.1} parent=23 // pred_check
          %p376 = pneg %p154
        $region38: #{tpu_custom_call.1} parent=23 // pred_check_branch
          %378 = sbr.rel (%p376) target = $region40
        $region39: #{tpu_custom_call.1} parent=23 // pred_region
          %p379 = scmp.lt.s32.totalorder %s31, 1
          %s380 = scalar_select %p379, %s31, 1
          %s381 = smul.addr %s380, 4
          %s382 = smul.addr %s381, 4
          %s383 = scalar_lea.vmem %s4, %s382
        $region40: #{tpu_custom_call.1} parent=23 // pred_fallthru
          _
        // Predicated region
        $region41: #{tpu_custom_call.1} parent=23 // pred_check
          %p384 = pneg %p180
        $region42: #{tpu_custom_call.1} parent=23 // pred_check_branch
          %386 = sbr.rel (%p384) target = $region44
        $region43: #{tpu_custom_call.1} parent=23 // pred_region
          %p387 = scmp.lt.s32.totalorder %s31, 1
          %s388 = scalar_select %p387, %s31, 1
          %s389 = smul.addr %s388, 4
          %s390 = smul.addr %s389, 4
          %s391 = scalar_lea.vmem %s5, %s390
        $region44: #{tpu_custom_call.1} parent=23 // pred_fallthru
          _
        // Predicated region
        $region45: #{tpu_custom_call.1} parent=23 // pred_check
          %p392 = pneg %p206
        $region46: #{tpu_custom_call.1} parent=23 // pred_check_branch
          %394 = sbr.rel (%p392) target = $region48
        $region47: #{tpu_custom_call.1} parent=23 // pred_region
          %p395 = scmp.lt.s32.totalorder %s31, 1
          %s396 = scalar_select %p395, %s31, 1
          %s397 = scalar_lea.vmem %s6, %s396
        $region48: #{tpu_custom_call.1} parent=23 // pred_fallthru
          _
        // Predicated region
        $region49: #{tpu_custom_call.1} parent=23 // pred_check
          %p398 = pneg %p232
        $region50: #{tpu_custom_call.1} parent=23 // pred_check_branch
          %400 = sbr.rel (%p398) target = $region52
        $region51: #{tpu_custom_call.1} parent=23 // pred_region
          %p401 = scmp.lt.s32.totalorder %s31, 1
          %s402 = scalar_select %p401, %s31, 1
          %s403 = smul.addr %s402, 4
          %s404 = smul.addr %s403, 4
          %s405 = scalar_lea.vmem %s7, %s404
        $region52: #{tpu_custom_call.1} parent=23 // pred_fallthru
          _
        // Predicated region
        $region53: #{tpu_custom_call.1} parent=23 // pred_check
          %p406 = pneg %p258
        $region54: #{tpu_custom_call.1} parent=23 // pred_check_branch
          %408 = sbr.rel (%p406) target = $region56
        $region55: #{tpu_custom_call.1} parent=23 // pred_region
          %p409 = scmp.lt.s32.totalorder %s31, 1
          %s410 = scalar_select %p409, %s31, 1
          %s411 = smul.addr %s410, 8
          %s412 = smul.addr %s411, 4
          %s413 = scalar_lea.vmem %s8, %s412
        $region56: #{tpu_custom_call.1} parent=23 // pred_fallthru
          _
      $region24: #{tpu_custom_call.1} parent=5 // pred_fallthru
        _
      %p414 = scmp.le.s32.totalorder 1, %s23
      %p415 = scmp.lt.s32.totalorder %s23, 5
      %p416 = pnand %p414, %p415
      %p417 = pneg %p416
      // Predicated region
      $region57: #{tpu_custom_call.1} parent=5 // pred_check
        _
      $region58: #{tpu_custom_call.1} parent=5 // pred_check_branch
        %419 = sbr.rel (%p416) target = $region60
      $region59: #{tpu_custom_call.1} parent=5 // pred_region
        %s420 = ssub.s32 %s23, 1
        %s421 = sand.u32 %s48, 1
        %s422 = scalar_lea.sflag [#allocation4], %s421
        %s423 = sand.u32 %s48, 1
        %s424 = smul.addr %s423, 8
        %s425 = scalar_lea.vmem [#allocation3], %s424
        // Predicated region
        $region61: #{tpu_custom_call.1} parent=59 // pred_check
          %p426 = pneg %p61
        $region62: #{tpu_custom_call.1} parent=59 // pred_check_branch
          %428 = sbr.rel (%p426) target = $region64
        $region63: #{tpu_custom_call.1} parent=59 // pred_region
          %429 = dma.done %s422, 128
        $region64: #{tpu_custom_call.1} parent=59 // pred_fallthru
          _
        // Predicated region
        $region65: #{tpu_custom_call.1} parent=59 // pred_check
          %p430 = pneg %p82
        $region66: #{tpu_custom_call.1} parent=59 // pred_check_branch
          %432 = sbr.rel (%p430) target = $region68
        $region67: #{tpu_custom_call.1} parent=59 // pred_region
          %433 = dma.done [#allocation7], 256
        $region68: #{tpu_custom_call.1} parent=59 // pred_fallthru
          _
        %s434 = sand.u32 %s48, 1
        %s435 = scalar_lea.sflag [#allocation4], %s434
        %s436 = sand.u32 %s48, 1
        %s437 = smul.addr %s436, 8
        %s438 = scalar_lea.vmem [#allocation3], %s437
        %p439 = pneg %p61
        %p440 = pneg %p58
        %p441 = pneg %p82
        %p442 = pneg %p79
        %p443 = scmp.lt.s32.totalorder %s32, 1
        %s444 = scalar_select %p443, %s32, 1
        %s445 = scalar_lea.vmem %s2, %s444
        %p446 = pneg %p108
        %p447 = pneg %p105
        %p448 = scmp.lt.s32.totalorder %s33, 1
        %s449 = scalar_select %p448, %s33, 1
        %s450 = scalar_lea.vmem %s3, %s449
        %p451 = pneg %p134
        %p452 = pneg %p131
        %p453 = scmp.lt.s32.totalorder %s33, 1
        %s454 = scalar_select %p453, %s33, 1
        %s455 = smul.addr %s454, 4
        %s456 = smul.addr %s455, 4
        %s457 = scalar_lea.vmem %s4, %s456
        %p458 = pneg %p160
        %p459 = pneg %p157
        %p460 = scmp.lt.s32.totalorder %s33, 1
        %s461 = scalar_select %p460, %s33, 1
        %s462 = smul.addr %s461, 4
        %s463 = smul.addr %s462, 4
        %s464 = scalar_lea.vmem %s5, %s463
        %p465 = pneg %p186
        %p466 = pneg %p183
        %p467 = scmp.lt.s32.totalorder %s33, 1
        %s468 = scalar_select %p467, %s33, 1
        %s469 = scalar_lea.vmem %s6, %s468
        %p470 = pneg %p212
        %p471 = pneg %p209
        %p472 = scmp.lt.s32.totalorder %s33, 1
        %s473 = scalar_select %p472, %s33, 1
        %s474 = smul.addr %s473, 4
        %s475 = smul.addr %s474, 4
        %s476 = scalar_lea.vmem %s7, %s475
        %p477 = pneg %p238
        %p478 = pneg %p235
        %p479 = scmp.lt.s32.totalorder %s33, 1
        %s480 = scalar_select %p479, %s33, 1
        %s481 = smul.addr %s480, 8
        %s482 = smul.addr %s481, 4
        %s483 = scalar_lea.vmem %s8, %s482
        %p484 = pneg %p264
        %p485 = pneg %p261
        %p486 = pneg %p285
        %p487 = pneg %p282
        %p488 = pneg %p311
        %p489 = pneg %p308
        %s490 = sand.u32 %s298, 1
        %s491 = scalar_lea.sflag [#allocation5], %s490
        %s492 = sand.u32 %s298, 1
        %s493 = scalar_lea.vmem [#allocation8], %s492
        %p494 = scmp.lt.s32.totalorder %s32, 1
        %s495 = scalar_select %p494, %s32, 1
        %s496 = scalar_lea.vmem %s2, %s495
        %p497 = scmp.lt.s32.totalorder %s33, 1
        %s498 = scalar_select %p497, %s33, 1
        %s499 = scalar_lea.vmem %s3, %s498
        %p500 = scmp.lt.s32.totalorder %s33, 1
        %s501 = scalar_select %p500, %s33, 1
        %s502 = smul.addr %s501, 4
        %s503 = smul.addr %s502, 4
        %s504 = scalar_lea.vmem %s4, %s503
        %p505 = scmp.lt.s32.totalorder %s33, 1
        %s506 = scalar_select %p505, %s33, 1
        %s507 = smul.addr %s506, 4
        %s508 = smul.addr %s507, 4
        %s509 = scalar_lea.vmem %s5, %s508
        %p510 = scmp.lt.s32.totalorder %s33, 1
        %s511 = scalar_select %p510, %s33, 1
        %s512 = scalar_lea.vmem %s6, %s511
        %p513 = scmp.lt.s32.totalorder %s33, 1
        %s514 = scalar_select %p513, %s33, 1
        %s515 = smul.addr %s514, 4
        %s516 = smul.addr %s515, 4
        %s517 = scalar_lea.vmem %s7, %s516
        %p518 = scmp.lt.s32.totalorder %s33, 1
        %s519 = scalar_select %p518, %s33, 1
        %s520 = smul.addr %s519, 8
        %s521 = smul.addr %s520, 4
        %s522 = scalar_lea.vmem %s8, %s521
        %p524 = scmp.eq.s32.totalorder %s33, 0
        // Predicated region
        $region69: #{tpu_custom_call.1} parent=59 // pred_check
          %p525 = pneg %p524
        $region70: #{tpu_custom_call.1} parent=59 // pred_check_branch
          %527 = sbr.rel (%p525) target = $region72
        $region71: #{tpu_custom_call.1} parent=59 // pred_region
          %v528 = vld [vmem:[%s425] sm:$0xff]
          %vm529 = vcmask 261120
          %530 = vst.msk [vmem:[#allocation2] sm:$0xff] %vm529, %v528
        $region72: #{tpu_custom_call.1} parent=59 // pred_fallthru
          _
        %v531 = vld [vmem:[#allocation2] sm:$0xff]
        %v532 = vld [vmem:[%s499] sm:$0x1]
        %v533 = vmul.f32 %v531, %v531
        %vm534 = vcmask 261120
        %v535 = vsel %vm534, %v533, 0.0
        %536 = vadd.xlane.f32.xlu0 %v535
        %v537 = vpop.xlane.xlu0 %536
        %v538 = vrcp.pop 32.0
        %v539 = vmul.f32 %v537, %v538
        %v540 = vadd.f32 %v539, 1e-06
        %v541 = vrsqrt.pop %v540
        %v542 = vmul.f32 %v531, %v541
        %v544 = vlaneseq
        %v545 = vshrl.u32 %v544, 7
        %v546 = vsub.s32 0, %v545
        %v547 = vrot.slane %v532, %v546
        %v549 = vmul.f32 %v542, %v547
        %v550 = vpack.c.bf16 %v549, %v549
        %v551 = vld [vmem:[%s504] sm:$0xf]
        %v552 = vld [vmem:[%s504 + $0x4] sm:$0xf]
        %v553 = vld [vmem:[%s504 + $0x8] sm:$0xf]
        %v554 = vld [vmem:[%s504 + $0xc] sm:$0xf]
        %v559 = vunpack.c.l.b16 %v551
        %v560 = vunpack.c.l.b16 %v552
        %v561 = vunpack.c.l.b16 %v553
        %v562 = vunpack.c.l.b16 %v554
        %v563 = vpack.c.b16 %v560, %v559
        %v564 = vpack.c.b16 %v562, %v561
        %v568 = vsel %vm534, %v550, 0
        %570 = vmatprep.subr.bf16.mxu0 0
        %571 = vmatpush1.bf16.msra.mxu0 %v563
        %572 = vmatprep.subr.bf16.mxu0 0
        %573 = vmatpush1.bf16.msra.mxu0 %v564
        %574 = vmatprep.subr.bf16.mxu0 0
        %575 = vmatpush1.bf16.msra.mxu0 0
        %576 = vmatprep.subr.bf16.mxu0 0
        %577 = vmatpush1.bf16.msra.mxu0 0
        %578 = vmatprep.subr.bf16.mxu0 0
        %579 = vmatpush1.bf16.msra.mxu0 0
        %580 = vmatprep.subr.bf16.mxu0 0
        %581 = vmatpush1.bf16.msra.mxu0 0
        %582 = vmatprep.subr.bf16.mxu0 0
        %583 = vmatpush1.bf16.msra.mxu0 0
        %584 = vmatprep.subr.bf16.mxu0 0
        %585 = vmatpush1.bf16.msra.mxu0 0
        %586 = vmatprep.subr.bf16.mxu0 0
        %587 = vmatpush1.bf16.msra.mxu0 0
        %588 = vmatprep.subr.bf16.mxu0 0
        %589 = vmatpush1.bf16.msra.mxu0 0
        %590 = vmatprep.subr.bf16.mxu0 0
        %591 = vmatpush1.bf16.msra.mxu0 0
        %592 = vmatprep.subr.bf16.mxu0 0
        %593 = vmatpush1.bf16.msra.mxu0 0
        %594 = vmatprep.subr.bf16.mxu0 0
        %595 = vmatpush1.bf16.msra.mxu0 0
        %596 = vmatprep.subr.bf16.mxu0 0
        %597 = vmatpush1.bf16.msra.mxu0 0
        %598 = vmatprep.subr.bf16.mxu0 0
        %599 = vmatpush1.bf16.msra.mxu0 0
        %600 = vmatprep.subr.bf16.mxu0 0
        %601 = vmatpush1.bf16.msra.mxu0 0
        %602 = vmatprep.mubr.bf16.mxu0 0
        %603 = vmatmul.mubr.bf16.gmra.mrb[0].mxu0 %v568
        %v604 = vpop.f32.mrb[0].mxu0
        %v605 = vadd.f32 0.0, %v604
        %v606 = vpop.f32.mrb[0].mxu0
        %v607 = vpop.f32.mrb[0].mxu0
        %v608 = vpop.f32.mrb[0].mxu0
        %609 = vdwg.mxu0
        %v610 = vpack.c.bf16 %v605, %v605
        %612 = vrot.lane.b32.xlu0 %v610, 120
        %v613 = vpop.permute.xlu0 %612
        %614 = vrot.lane.b32.xlu0 %v610, 112
        %v615 = vpop.permute.xlu0 %614
        %616 = vrot.lane.b32.xlu0 %v610, 104
        %v617 = vpop.permute.xlu0 %616
        %v619 = vunpack.c.l.s4 1983009808
        %v620 = vunpack.c.0.s8 %v619
        %v621 = vlaneseq
        %v622 = vshrl.u32 %v621, 7
        %v623 = vsub.s32 %v620, %v622
        %v624 = vrot.slane %v610, %v623
        %v627 = vunpack.c.l.s4 1983009808
        %v628 = vunpack.c.0.s8 %v627
        %v629 = vlaneseq
        %v630 = vshrl.u32 %v629, 7
        %v631 = vsub.s32 %v628, %v630
        %v632 = vrot.slane %v615, %v631
        %v633 = vcombine.low %v624, %v632
        %v634 = vcombine.high %v624, %v632
        %v636 = vunpack.c.l.s4 1934713408
        %v637 = vunpack.c.0.s8 %v636
        %v638 = vlaneseq
        %v639 = vshrl.u32 %v638, 7
        %v640 = vsub.s32 %v637, %v639
        %v641 = vrot.slane %v633, %v640
        %v643 = vunpack.c.l.s4 1934713408
        %v644 = vunpack.c.0.s8 %v643
        %v645 = vlaneseq
        %v646 = vshrl.u32 %v645, 7
        %v647 = vsub.s32 %v644, %v646
        %v648 = vrot.slane %v634, %v647
        %v649 = vcombine.high %v641, 0
        %v650 = vcombine.high %v648, 0
        %v653 = vunpack.c.l.s4 1983009808
        %v654 = vunpack.c.0.s8 %v653
        %v655 = vlaneseq
        %v656 = vshrl.u32 %v655, 7
        %v657 = vsub.s32 %v654, %v656
        %v658 = vrot.slane %v613, %v657
        %v661 = vunpack.c.l.s4 1983009808
        %v662 = vunpack.c.0.s8 %v661
        %v663 = vlaneseq
        %v664 = vshrl.u32 %v663, 7
        %v665 = vsub.s32 %v662, %v664
        %v666 = vrot.slane %v617, %v665
        %v667 = vcombine.low %v658, %v666
        %v668 = vcombine.high %v658, %v666
        %v670 = vunpack.c.l.s4 1934713408
        %v671 = vunpack.c.0.s8 %v670
        %v672 = vlaneseq
        %v673 = vshrl.u32 %v672, 7
        %v674 = vsub.s32 %v671, %v673
        %v675 = vrot.slane %v667, %v674
        %v677 = vunpack.c.l.s4 1934713408
        %v678 = vunpack.c.0.s8 %v677
        %v679 = vlaneseq
        %v680 = vshrl.u32 %v679, 7
        %v681 = vsub.s32 %v678, %v680
        %v682 = vrot.slane %v668, %v681
        %v683 = vcombine.high %v675, 0
        %v684 = vcombine.high %v682, 0
        %v687 = vpack.i.b16 %v675, %v641
        %v689 = vshrl.u32 %v641, 16
        %v690 = vshrl.u32 %v675, 16
        %v691 = vpack.i.b16 %v690, %v689
        %v695 = vpack.i.b16 %v683, %v649
        %v697 = vshrl.u32 %v649, 16
        %v698 = vshrl.u32 %v683, 16
        %v699 = vpack.i.b16 %v698, %v697
        %v703 = vpack.i.b16 %v682, %v648
        %v705 = vshrl.u32 %v648, 16
        %v706 = vshrl.u32 %v682, 16
        %v707 = vpack.i.b16 %v706, %v705
        %v711 = vpack.i.b16 %v684, %v650
        %v713 = vshrl.u32 %v650, 16
        %v714 = vshrl.u32 %v684, 16
        %v715 = vpack.i.b16 %v714, %v713
        %v717 = vcombine.low %v687, %v703
        %v719 = vunpack.c.l.s4 1983009808
        %v720 = vunpack.c.0.s8 %v719
        %v721 = vlaneseq
        %v722 = vshrl.u32 %v721, 7
        %v723 = vsub.s32 %v720, %v722
        %v724 = vrot.slane %v717, %v723
        %v725 = vcombine.low %v695, %v711
        %v727 = vunpack.c.l.s4 1983009808
        %v728 = vunpack.c.0.s8 %v727
        %v729 = vlaneseq
        %v730 = vshrl.u32 %v729, 7
        %v731 = vsub.s32 %v728, %v730
        %v732 = vrot.slane %v725, %v731
        %v733 = vcombine.low %v724, %v732
        %v735 = vunpack.c.l.s4 1934713408
        %v736 = vunpack.c.0.s8 %v735
        %v737 = vlaneseq
        %v738 = vshrl.u32 %v737, 7
        %v739 = vsub.s32 %v736, %v738
        %v740 = vrot.slane %v733, %v739
        %v741 = vcombine.high %v740, 0
        %v742 = vcombine.low %v691, %v707
        %v744 = vunpack.c.l.s4 1983009808
        %v745 = vunpack.c.0.s8 %v744
        %v746 = vlaneseq
        %v747 = vshrl.u32 %v746, 7
        %v748 = vsub.s32 %v745, %v747
        %v749 = vrot.slane %v742, %v748
        %v750 = vcombine.low %v699, %v715
        %v752 = vunpack.c.l.s4 1983009808
        %v753 = vunpack.c.0.s8 %v752
        %v754 = vlaneseq
        %v755 = vshrl.u32 %v754, 7
        %v756 = vsub.s32 %v753, %v755
        %v757 = vrot.slane %v750, %v756
        %v758 = vcombine.low %v749, %v757
        %v760 = vunpack.c.l.s4 1934713408
        %v761 = vunpack.c.0.s8 %v760
        %v762 = vlaneseq
        %v763 = vshrl.u32 %v762, 7
        %v764 = vsub.s32 %v761, %v763
        %v765 = vrot.slane %v758, %v764
        %v766 = vcombine.high %v765, 0
        %v769 = vpack.i.b16 %v765, %v740
        %v770 = vshrl.u32 %v740, 16
        %v771 = vshrl.u32 %v765, 16
        %v772 = vpack.i.b16 %v771, %v770
        %v775 = vpack.i.b16 %v766, %v741
        %v776 = vshrl.u32 %v741, 16
        %v777 = vshrl.u32 %v766, 16
        %v778 = vpack.i.b16 %v777, %v776
        %779 = vrot.lane.b32.xlu0 %v610, 96
        %v780 = vpop.permute.xlu0 %779
        %781 = vrot.lane.b32.xlu0 %v613, 96
        %v782 = vpop.permute.xlu0 %781
        %783 = vrot.lane.b32.xlu0 %v615, 96
        %v784 = vpop.permute.xlu0 %783
        %785 = vrot.lane.b32.xlu0 %v617, 96
        %v786 = vpop.permute.xlu0 %785
        %v789 = vunpack.c.l.s4 1983009808
        %v790 = vunpack.c.0.s8 %v789
        %v791 = vlaneseq
        %v792 = vshrl.u32 %v791, 7
        %v793 = vsub.s32 %v790, %v792
        %v794 = vrot.slane %v780, %v793
        %v797 = vunpack.c.l.s4 1983009808
        %v798 = vunpack.c.0.s8 %v797
        %v799 = vlaneseq
        %v800 = vshrl.u32 %v799, 7
        %v801 = vsub.s32 %v798, %v800
        %v802 = vrot.slane %v784, %v801
        %v803 = vcombine.low %v794, %v802
        %v804 = vcombine.high %v794, %v802
        %v806 = vunpack.c.l.s4 1934713408
        %v807 = vunpack.c.0.s8 %v806
        %v808 = vlaneseq
        %v809 = vshrl.u32 %v808, 7
        %v810 = vsub.s32 %v807, %v809
        %v811 = vrot.slane %v803, %v810
        %v813 = vunpack.c.l.s4 1934713408
        %v814 = vunpack.c.0.s8 %v813
        %v815 = vlaneseq
        %v816 = vshrl.u32 %v815, 7
        %v817 = vsub.s32 %v814, %v816
        %v818 = vrot.slane %v804, %v817
        %v819 = vcombine.high %v811, 0
        %v820 = vcombine.high %v818, 0
        %v823 = vunpack.c.l.s4 1983009808
        %v824 = vunpack.c.0.s8 %v823
        %v825 = vlaneseq
        %v826 = vshrl.u32 %v825, 7
        %v827 = vsub.s32 %v824, %v826
        %v828 = vrot.slane %v782, %v827
        %v831 = vunpack.c.l.s4 1983009808
        %v832 = vunpack.c.0.s8 %v831
        %v833 = vlaneseq
        %v834 = vshrl.u32 %v833, 7
        %v835 = vsub.s32 %v832, %v834
        %v836 = vrot.slane %v786, %v835
        %v837 = vcombine.low %v828, %v836
        %v838 = vcombine.high %v828, %v836
        %v840 = vunpack.c.l.s4 1934713408
        %v841 = vunpack.c.0.s8 %v840
        %v842 = vlaneseq
        %v843 = vshrl.u32 %v842, 7
        %v844 = vsub.s32 %v841, %v843
        %v845 = vrot.slane %v837, %v844
        %v847 = vunpack.c.l.s4 1934713408
        %v848 = vunpack.c.0.s8 %v847
        %v849 = vlaneseq
        %v850 = vshrl.u32 %v849, 7
        %v851 = vsub.s32 %v848, %v850
        %v852 = vrot.slane %v838, %v851
        %v853 = vcombine.high %v845, 0
        %v854 = vcombine.high %v852, 0
        %v857 = vpack.i.b16 %v845, %v811
        %v859 = vshrl.u32 %v811, 16
        %v860 = vshrl.u32 %v845, 16
        %v861 = vpack.i.b16 %v860, %v859
        %v865 = vpack.i.b16 %v853, %v819
        %v867 = vshrl.u32 %v819, 16
        %v868 = vshrl.u32 %v853, 16
        %v869 = vpack.i.b16 %v868, %v867
        %v873 = vpack.i.b16 %v852, %v818
        %v875 = vshrl.u32 %v818, 16
        %v876 = vshrl.u32 %v852, 16
        %v877 = vpack.i.b16 %v876, %v875
        %v881 = vpack.i.b16 %v854, %v820
        %v883 = vshrl.u32 %v820, 16
        %v884 = vshrl.u32 %v854, 16
        %v885 = vpack.i.b16 %v884, %v883
        %v887 = vcombine.low %v857, %v873
        %v889 = vunpack.c.l.s4 1983009808
        %v890 = vunpack.c.0.s8 %v889
        %v891 = vlaneseq
        %v892 = vshrl.u32 %v891, 7
        %v893 = vsub.s32 %v890, %v892
        %v894 = vrot.slane %v887, %v893
        %v895 = vcombine.low %v865, %v881
        %v897 = vunpack.c.l.s4 1983009808
        %v898 = vunpack.c.0.s8 %v897
        %v899 = vlaneseq
        %v900 = vshrl.u32 %v899, 7
        %v901 = vsub.s32 %v898, %v900
        %v902 = vrot.slane %v895, %v901
        %v903 = vcombine.low %v894, %v902
        %v905 = vunpack.c.l.s4 1934713408
        %v906 = vunpack.c.0.s8 %v905
        %v907 = vlaneseq
        %v908 = vshrl.u32 %v907, 7
        %v909 = vsub.s32 %v906, %v908
        %v910 = vrot.slane %v903, %v909
        %v911 = vcombine.high %v910, 0
        %v912 = vcombine.low %v861, %v877
        %v914 = vunpack.c.l.s4 1983009808
        %v915 = vunpack.c.0.s8 %v914
        %v916 = vlaneseq
        %v917 = vshrl.u32 %v916, 7
        %v918 = vsub.s32 %v915, %v917
        %v919 = vrot.slane %v912, %v918
        %v920 = vcombine.low %v869, %v885
        %v922 = vunpack.c.l.s4 1983009808
        %v923 = vunpack.c.0.s8 %v922
        %v924 = vlaneseq
        %v925 = vshrl.u32 %v924, 7
        %v926 = vsub.s32 %v923, %v925
        %v927 = vrot.slane %v920, %v926
        %v928 = vcombine.low %v919, %v927
        %v930 = vunpack.c.l.s4 1934713408
        %v931 = vunpack.c.0.s8 %v930
        %v932 = vlaneseq
        %v933 = vshrl.u32 %v932, 7
        %v934 = vsub.s32 %v931, %v933
        %v935 = vrot.slane %v928, %v934
        %v936 = vcombine.high %v935, 0
        %v939 = vpack.i.b16 %v935, %v910
        %v940 = vshrl.u32 %v910, 16
        %v941 = vshrl.u32 %v935, 16
        %v942 = vpack.i.b16 %v941, %v940
        %v945 = vpack.i.b16 %v936, %v911
        %v946 = vshrl.u32 %v911, 16
        %v947 = vshrl.u32 %v936, 16
        %v948 = vpack.i.b16 %v947, %v946
        %949 = vrot.lane.b32.xlu0 %v610, 64
        %v950 = vpop.permute.xlu0 %949
        %951 = vrot.lane.b32.xlu0 %v613, 64
        %v952 = vpop.permute.xlu0 %951
        %953 = vrot.lane.b32.xlu0 %v615, 64
        %v954 = vpop.permute.xlu0 %953
        %955 = vrot.lane.b32.xlu0 %v617, 64
        %v956 = vpop.permute.xlu0 %955
        %v959 = vunpack.c.l.s4 1983009808
        %v960 = vunpack.c.0.s8 %v959
        %v961 = vlaneseq
        %v962 = vshrl.u32 %v961, 7
        %v963 = vsub.s32 %v960, %v962
        %v964 = vrot.slane %v950, %v963
        %v967 = vunpack.c.l.s4 1983009808
        %v968 = vunpack.c.0.s8 %v967
        %v969 = vlaneseq
        %v970 = vshrl.u32 %v969, 7
        %v971 = vsub.s32 %v968, %v970
        %v972 = vrot.slane %v954, %v971
        %v973 = vcombine.low %v964, %v972
        %v974 = vcombine.high %v964, %v972
        %v976 = vunpack.c.l.s4 1934713408
        %v977 = vunpack.c.0.s8 %v976
        %v978 = vlaneseq
        %v979 = vshrl.u32 %v978, 7
        %v980 = vsub.s32 %v977, %v979
        %v981 = vrot.slane %v973, %v980
        %v983 = vunpack.c.l.s4 1934713408
        %v984 = vunpack.c.0.s8 %v983
        %v985 = vlaneseq
        %v986 = vshrl.u32 %v985, 7
        %v987 = vsub.s32 %v984, %v986
        %v988 = vrot.slane %v974, %v987
        %v989 = vcombine.high %v981, 0
        %v990 = vcombine.high %v988, 0
        %v993 = vunpack.c.l.s4 1983009808
        %v994 = vunpack.c.0.s8 %v993
        %v995 = vlaneseq
        %v996 = vshrl.u32 %v995, 7
        %v997 = vsub.s32 %v994, %v996
        %v998 = vrot.slane %v952, %v997
        %v1001 = vunpack.c.l.s4 1983009808
        %v1002 = vunpack.c.0.s8 %v1001
        %v1003 = vlaneseq
        %v1004 = vshrl.u32 %v1003, 7
        %v1005 = vsub.s32 %v1002, %v1004
        %v1006 = vrot.slane %v956, %v1005
        %v1007 = vcombine.low %v998, %v1006
        %v1008 = vcombine.high %v998, %v1006
        %v1010 = vunpack.c.l.s4 1934713408
        %v1011 = vunpack.c.0.s8 %v1010
        %v1012 = vlaneseq
        %v1013 = vshrl.u32 %v1012, 7
        %v1014 = vsub.s32 %v1011, %v1013
        %v1015 = vrot.slane %v1007, %v1014
        %v1017 = vunpack.c.l.s4 1934713408
        %v1018 = vunpack.c.0.s8 %v1017
        %v1019 = vlaneseq
        %v1020 = vshrl.u32 %v1019, 7
        %v1021 = vsub.s32 %v1018, %v1020
        %v1022 = vrot.slane %v1008, %v1021
        %v1023 = vcombine.high %v1015, 0
        %v1024 = vcombine.high %v1022, 0
        %v1027 = vpack.i.b16 %v1015, %v981
        %v1029 = vshrl.u32 %v981, 16
        %v1030 = vshrl.u32 %v1015, 16
        %v1031 = vpack.i.b16 %v1030, %v1029
        %v1035 = vpack.i.b16 %v1023, %v989
        %v1037 = vshrl.u32 %v989, 16
        %v1038 = vshrl.u32 %v1023, 16
        %v1039 = vpack.i.b16 %v1038, %v1037
        %v1043 = vpack.i.b16 %v1022, %v988
        %v1045 = vshrl.u32 %v988, 16
        %v1046 = vshrl.u32 %v1022, 16
        %v1047 = vpack.i.b16 %v1046, %v1045
        %v1051 = vpack.i.b16 %v1024, %v990
        %v1053 = vshrl.u32 %v990, 16
        %v1054 = vshrl.u32 %v1024, 16
        %v1055 = vpack.i.b16 %v1054, %v1053
        %v1057 = vcombine.low %v1027, %v1043
        %v1059 = vunpack.c.l.s4 1983009808
        %v1060 = vunpack.c.0.s8 %v1059
        %v1061 = vlaneseq
        %v1062 = vshrl.u32 %v1061, 7
        %v1063 = vsub.s32 %v1060, %v1062
        %v1064 = vrot.slane %v1057, %v1063
        %v1065 = vcombine.low %v1035, %v1051
        %v1067 = vunpack.c.l.s4 1983009808
        %v1068 = vunpack.c.0.s8 %v1067
        %v1069 = vlaneseq
        %v1070 = vshrl.u32 %v1069, 7
        %v1071 = vsub.s32 %v1068, %v1070
        %v1072 = vrot.slane %v1065, %v1071
        %v1073 = vcombine.low %v1064, %v1072
        %v1075 = vunpack.c.l.s4 1934713408
        %v1076 = vunpack.c.0.s8 %v1075
        %v1077 = vlaneseq
        %v1078 = vshrl.u32 %v1077, 7
        %v1079 = vsub.s32 %v1076, %v1078
        %v1080 = vrot.slane %v1073, %v1079
        %v1081 = vcombine.high %v1080, 0
        %v1082 = vcombine.low %v1031, %v1047
        %v1084 = vunpack.c.l.s4 1983009808
        %v1085 = vunpack.c.0.s8 %v1084
        %v1086 = vlaneseq
        %v1087 = vshrl.u32 %v1086, 7
        %v1088 = vsub.s32 %v1085, %v1087
        %v1089 = vrot.slane %v1082, %v1088
        %v1090 = vcombine.low %v1039, %v1055
        %v1092 = vunpack.c.l.s4 1983009808
        %v1093 = vunpack.c.0.s8 %v1092
        %v1094 = vlaneseq
        %v1095 = vshrl.u32 %v1094, 7
        %v1096 = vsub.s32 %v1093, %v1095
        %v1097 = vrot.slane %v1090, %v1096
        %v1098 = vcombine.low %v1089, %v1097
        %v1100 = vunpack.c.l.s4 1934713408
        %v1101 = vunpack.c.0.s8 %v1100
        %v1102 = vlaneseq
        %v1103 = vshrl.u32 %v1102, 7
        %v1104 = vsub.s32 %v1101, %v1103
        %v1105 = vrot.slane %v1098, %v1104
        %v1106 = vcombine.high %v1105, 0
        %v1109 = vpack.i.b16 %v1105, %v1080
        %v1110 = vshrl.u32 %v1080, 16
        %v1111 = vshrl.u32 %v1105, 16
        %v1112 = vpack.i.b16 %v1111, %v1110
        %v1115 = vpack.i.b16 %v1106, %v1081
        %v1116 = vshrl.u32 %v1081, 16
        %v1117 = vshrl.u32 %v1106, 16
        %v1118 = vpack.i.b16 %v1117, %v1116
        %v1119 = vld [vmem:[#allocation6] sm:$0xf]
        %v1120 = vld [vmem:[#allocation6 + $0x4] sm:$0xf]
        %v1121 = vld [vmem:[#allocation6 + $0x8] sm:$0xf]
        %v1122 = vld [vmem:[#allocation6 + $0xc] sm:$0xf]
        %v1123 = vunpack.c.l.bf16 %v1119
        %v1124 = vunpack.c.l.bf16 %v1120
        %v1125 = vunpack.c.l.bf16 %v1121
        %v1126 = vunpack.c.l.bf16 %v1122
        %vm1127 = vcmask 64512
        %v1129 = vsel %vm1127, %v769, 0
        %v1132 = vsel %vm1127, %v939, 0
        %1134 = vmatprep.subr.bf16.mxu0 0
        %1135 = vmatpush1.bf16.xpose.msra.mxu0 %v1132
        %1136 = vmatprep.subr.bf16.mxu0 0
        %1137 = vmatpush1.bf16.xpose.msra.mxu0 0
        %1138 = vmatprep.subr.bf16.mxu0 0
        %1139 = vmatpush1.bf16.xpose.msra.mxu0 0
        %1140 = vmatprep.subr.bf16.mxu0 0
        %1141 = vmatpush1.bf16.xpose.msra.mxu0 0
        %1142 = vmatprep.subr.bf16.mxu0 0
        %1143 = vmatpush1.bf16.xpose.msra.mxu0 0
        %1144 = vmatprep.subr.bf16.mxu0 0
        %1145 = vmatpush1.bf16.xpose.msra.mxu0 0
        %1146 = vmatprep.subr.bf16.mxu0 0
        %1147 = vmatpush1.bf16.xpose.msra.mxu0 0
        %1148 = vmatprep.subr.bf16.mxu0 0
        %1149 = vmatpush1.bf16.xpose.msra.mxu0 0
        %1150 = vmatprep.subr.bf16.mxu0 0
        %1151 = vmatpush1.bf16.xpose.msra.mxu0 0
        %1152 = vmatprep.subr.bf16.mxu0 0
        %1153 = vmatpush1.bf16.xpose.msra.mxu0 0
        %1154 = vmatprep.subr.bf16.mxu0 0
        %1155 = vmatpush1.bf16.xpose.msra.mxu0 0
        %1156 = vmatprep.subr.bf16.mxu0 0
        %1157 = vmatpush1.bf16.xpose.msra.mxu0 0
        %1158 = vmatprep.subr.bf16.mxu0 0
        %1159 = vmatpush1.bf16.xpose.msra.mxu0 0
        %1160 = vmatprep.subr.bf16.mxu0 0
        %1161 = vmatpush1.bf16.xpose.msra.mxu0 0
        %1162 = vmatprep.subr.bf16.mxu0 0
        %1163 = vmatpush1.bf16.xpose.msra.mxu0 0
        %1164 = vmatprep.subr.bf16.mxu0 0
        %1165 = vmatpush1.bf16.xpose.msra.mxu0 0
        %1166 = vmatprep.mubr.bf16.mxu0 0
        %1167 = vmatmul.mubr.bf16.gmra.mrb[0].mxu0 %v1129
        %v1168 = vpop.f32.mrb[0].mxu0
        %v1169 = vadd.f32 %v1123, %v1168
        %v1170 = vpop.f32.mrb[0].mxu0
        %v1171 = vpop.f32.mrb[0].mxu0
        %v1172 = vpop.f32.mrb[0].mxu0
        %1173 = vdwg.mxu0
        %v1175 = vsel %vm1127, %v772, 0
        %v1178 = vsel %vm1127, %v942, 0
        %1180 = vmatprep.subr.bf16.mxu0 0
        %1181 = vmatpush1.bf16.xpose.msra.mxu0 %v1178
        %1182 = vmatprep.subr.bf16.mxu0 0
        %1183 = vmatpush1.bf16.xpose.msra.mxu0 0
        %1184 = vmatprep.subr.bf16.mxu0 0
        %1185 = vmatpush1.bf16.xpose.msra.mxu0 0
        %1186 = vmatprep.subr.bf16.mxu0 0
        %1187 = vmatpush1.bf16.xpose.msra.mxu0 0
        %1188 = vmatprep.subr.bf16.mxu0 0
        %1189 = vmatpush1.bf16.xpose.msra.mxu0 0
        %1190 = vmatprep.subr.bf16.mxu0 0
        %1191 = vmatpush1.bf16.xpose.msra.mxu0 0
        %1192 = vmatprep.subr.bf16.mxu0 0
        %1193 = vmatpush1.bf16.xpose.msra.mxu0 0
        %1194 = vmatprep.subr.bf16.mxu0 0
        %1195 = vmatpush1.bf16.xpose.msra.mxu0 0
        %1196 = vmatprep.subr.bf16.mxu0 0
        %1197 = vmatpush1.bf16.xpose.msra.mxu0 0
        %1198 = vmatprep.subr.bf16.mxu0 0
        %1199 = vmatpush1.bf16.xpose.msra.mxu0 0
        %1200 = vmatprep.subr.bf16.mxu0 0
        %1201 = vmatpush1.bf16.xpose.msra.mxu0 0
        %1202 = vmatprep.subr.bf16.mxu0 0
        %1203 = vmatpush1.bf16.xpose.msra.mxu0 0
        %1204 = vmatprep.subr.bf16.mxu0 0
        %1205 = vmatpush1.bf16.xpose.msra.mxu0 0
        %1206 = vmatprep.subr.bf16.mxu0 0
        %1207 = vmatpush1.bf16.xpose.msra.mxu0 0
        %1208 = vmatprep.subr.bf16.mxu0 0
        %1209 = vmatpush1.bf16.xpose.msra.mxu0 0
        %1210 = vmatprep.subr.bf16.mxu0 0
        %1211 = vmatpush1.bf16.xpose.msra.mxu0 0
        %1212 = vmatprep.mubr.bf16.mxu0 0
        %1213 = vmatmul.mubr.bf16.gmra.mrb[0].mxu0 %v1175
        %v1214 = vpop.f32.mrb[0].mxu0
        %v1215 = vadd.f32 %v1124, %v1214
        %v1216 = vpop.f32.mrb[0].mxu0
        %v1217 = vpop.f32.mrb[0].mxu0
        %v1218 = vpop.f32.mrb[0].mxu0
        %1219 = vdwg.mxu0
        %v1221 = vsel %vm1127, %v775, 0
        %v1224 = vsel %vm1127, %v945, 0
        %1226 = vmatprep.subr.bf16.mxu0 0
        %1227 = vmatpush1.bf16.xpose.msra.mxu0 %v1224
        %1228 = vmatprep.subr.bf16.mxu0 0
        %1229 = vmatpush1.bf16.xpose.msra.mxu0 0
        %1230 = vmatprep.subr.bf16.mxu0 0
        %1231 = vmatpush1.bf16.xpose.msra.mxu0 0
        %1232 = vmatprep.subr.bf16.mxu0 0
        %1233 = vmatpush1.bf16.xpose.msra.mxu0 0
        %1234 = vmatprep.subr.bf16.mxu0 0
        %1235 = vmatpush1.bf16.xpose.msra.mxu0 0
        %1236 = vmatprep.subr.bf16.mxu0 0
        %1237 = vmatpush1.bf16.xpose.msra.mxu0 0
        %1238 = vmatprep.subr.bf16.mxu0 0
        %1239 = vmatpush1.bf16.xpose.msra.mxu0 0
        %1240 = vmatprep.subr.bf16.mxu0 0
        %1241 = vmatpush1.bf16.xpose.msra.mxu0 0
        %1242 = vmatprep.subr.bf16.mxu0 0
        %1243 = vmatpush1.bf16.xpose.msra.mxu0 0
        %1244 = vmatprep.subr.bf16.mxu0 0
        %1245 = vmatpush1.bf16.xpose.msra.mxu0 0
        %1246 = vmatprep.subr.bf16.mxu0 0
        %1247 = vmatpush1.bf16.xpose.msra.mxu0 0
        %1248 = vmatprep.subr.bf16.mxu0 0
        %1249 = vmatpush1.bf16.xpose.msra.mxu0 0
        %1250 = vmatprep.subr.bf16.mxu0 0
        %1251 = vmatpush1.bf16.xpose.msra.mxu0 0
        %1252 = vmatprep.subr.bf16.mxu0 0
        %1253 = vmatpush1.bf16.xpose.msra.mxu0 0
        %1254 = vmatprep.subr.bf16.mxu0 0
        %1255 = vmatpush1.bf16.xpose.msra.mxu0 0
        %1256 = vmatprep.subr.bf16.mxu0 0
        %1257 = vmatpush1.bf16.xpose.msra.mxu0 0
        %1258 = vmatprep.mubr.bf16.mxu0 0
        %1259 = vmatmul.mubr.bf16.gmra.mrb[0].mxu0 %v1221
        %v1260 = vpop.f32.mrb[0].mxu0
        %v1261 = vadd.f32 %v1125, %v1260
        %v1262 = vpop.f32.mrb[0].mxu0
        %v1263 = vpop.f32.mrb[0].mxu0
        %v1264 = vpop.f32.mrb[0].mxu0
        %1265 = vdwg.mxu0
        %v1267 = vsel %vm1127, %v778, 0
        %v1270 = vsel %vm1127, %v948, 0
        %1272 = vmatprep.subr.bf16.mxu0 0
        %1273 = vmatpush1.bf16.xpose.msra.mxu0 %v1270
        %1274 = vmatprep.subr.bf16.mxu0 0
        %1275 = vmatpush1.bf16.xpose.msra.mxu0 0
        %1276 = vmatprep.subr.bf16.mxu0 0
        %1277 = vmatpush1.bf16.xpose.msra.mxu0 0
        %1278 = vmatprep.subr.bf16.mxu0 0
        %1279 = vmatpush1.bf16.xpose.msra.mxu0 0
        %1280 = vmatprep.subr.bf16.mxu0 0
        %1281 = vmatpush1.bf16.xpose.msra.mxu0 0
        %1282 = vmatprep.subr.bf16.mxu0 0
        %1283 = vmatpush1.bf16.xpose.msra.mxu0 0
        %1284 = vmatprep.subr.bf16.mxu0 0
        %1285 = vmatpush1.bf16.xpose.msra.mxu0 0
        %1286 = vmatprep.subr.bf16.mxu0 0
        %1287 = vmatpush1.bf16.xpose.msra.mxu0 0
        %1288 = vmatprep.subr.bf16.mxu0 0
        %1289 = vmatpush1.bf16.xpose.msra.mxu0 0
        %1290 = vmatprep.subr.bf16.mxu0 0
        %1291 = vmatpush1.bf16.xpose.msra.mxu0 0
        %1292 = vmatprep.subr.bf16.mxu0 0
        %1293 = vmatpush1.bf16.xpose.msra.mxu0 0
        %1294 = vmatprep.subr.bf16.mxu0 0
        %1295 = vmatpush1.bf16.xpose.msra.mxu0 0
        %1296 = vmatprep.subr.bf16.mxu0 0
        %1297 = vmatpush1.bf16.xpose.msra.mxu0 0
        %1298 = vmatprep.subr.bf16.mxu0 0
        %1299 = vmatpush1.bf16.xpose.msra.mxu0 0
        %1300 = vmatprep.subr.bf16.mxu0 0
        %1301 = vmatpush1.bf16.xpose.msra.mxu0 0
        %1302 = vmatprep.subr.bf16.mxu0 0
        %1303 = vmatpush1.bf16.xpose.msra.mxu0 0
        %1304 = vmatprep.mubr.bf16.mxu0 0
        %1305 = vmatmul.mubr.bf16.gmra.mrb[0].mxu0 %v1267
        %v1306 = vpop.f32.mrb[0].mxu0
        %v1307 = vadd.f32 %v1126, %v1306
        %v1308 = vpop.f32.mrb[0].mxu0
        %v1309 = vpop.f32.mrb[0].mxu0
        %v1310 = vpop.f32.mrb[0].mxu0
        %1311 = vdwg.mxu0
        %v1312 = vld [vmem:[%s496] sm:$0x1]
        %v1314 = vlaneseq
        %v1315 = vshrl.u32 %v1314, 7
        %v1316 = vsub.s32 0, %v1315
        %v1317 = vrot.slane %v1312, %v1316
        %v1319 = vadd.f32 %v1169, %v1317
        %v1320 = vadd.f32 %v1215, %v1317
        %v1321 = vadd.f32 %v1261, %v1317
        %v1322 = vadd.f32 %v1307, %v1317
        %v1323 = vsel %vm1127, %v1319, -inf
        %1324 = vmax.xlane.f32.xlu0 %v1323
        %v1325 = vpop.xlane.xlu0 %1324
        %v1326 = vsel %vm1127, %v1320, -inf
        %1327 = vmax.xlane.f32.xlu0 %v1326
        %v1328 = vpop.xlane.xlu0 %1327
        %v1329 = vsel %vm1127, %v1321, -inf
        %1330 = vmax.xlane.f32.xlu0 %v1329
        %v1331 = vpop.xlane.xlu0 %1330
        %v1332 = vsel %vm1127, %v1322, -inf
        %1333 = vmax.xlane.f32.xlu0 %v1332
        %v1334 = vpop.xlane.xlu0 %1333
        %v1335 = vsub.f32 %v1319, %v1325
        %v1336 = vsub.f32 %v1320, %v1328
        %v1337 = vsub.f32 %v1321, %v1331
        %v1338 = vsub.f32 %v1322, %v1334
        %v1339 = vmul.f32 %v1335, 1.442695
        %v1340 = vpow.pop %v1339
        %v1341 = vmul.f32 %v1336, 1.442695
        %v1342 = vpow.pop %v1341
        %v1343 = vmul.f32 %v1337, 1.442695
        %v1344 = vpow.pop %v1343
        %v1345 = vmul.f32 %v1338, 1.442695
        %v1346 = vpow.pop %v1345
        %v1347 = vsel %vm1127, %v1340, 0.0
        %1348 = vadd.xlane.f32.xlu0 %v1347
        %v1349 = vpop.xlane.xlu0 %1348
        %v1350 = vsel %vm1127, %v1342, 0.0
        %1351 = vadd.xlane.f32.xlu0 %v1350
        %v1352 = vpop.xlane.xlu0 %1351
        %v1353 = vsel %vm1127, %v1344, 0.0
        %1354 = vadd.xlane.f32.xlu0 %v1353
        %v1355 = vpop.xlane.xlu0 %1354
        %v1356 = vsel %vm1127, %v1346, 0.0
        %1357 = vadd.xlane.f32.xlu0 %v1356
        %v1358 = vpop.xlane.xlu0 %1357
        %v1359 = vrcp.pop %v1349
        %v1360 = vrcp.pop %v1352
        %v1361 = vrcp.pop %v1355
        %v1362 = vrcp.pop %v1358
        %v1363 = vmul.f32 %v1340, %v1359
        %v1364 = vmul.f32 %v1342, %v1360
        %v1365 = vmul.f32 %v1344, %v1361
        %v1366 = vmul.f32 %v1346, %v1362
        %v1367 = vpack.c.bf16 %v1363, %v1363
        %v1368 = vpack.c.bf16 %v1364, %v1364
        %v1369 = vpack.c.bf16 %v1365, %v1365
        %v1370 = vpack.c.bf16 %v1366, %v1366
        %v1372 = vsel %vm1127, %v1367, 0
        %vm1374 = vcmask 1043456
        %v1376 = vsel %vm1374, %v1109, 0
        %1378 = vmatprep.subr.bf16.mxu0 0
        %1379 = vmatpush1.bf16.msra.mxu0 %v1376
        %1380 = vmatprep.subr.bf16.mxu0 0
        %1381 = vmatpush1.bf16.msra.mxu0 0
        %1382 = vmatprep.subr.bf16.mxu0 0
        %1383 = vmatpush1.bf16.msra.mxu0 0
        %1384 = vmatprep.subr.bf16.mxu0 0
        %1385 = vmatpush1.bf16.msra.mxu0 0
        %1386 = vmatprep.subr.bf16.mxu0 0
        %1387 = vmatpush1.bf16.msra.mxu0 0
        %1388 = vmatprep.subr.bf16.mxu0 0
        %1389 = vmatpush1.bf16.msra.mxu0 0
        %1390 = vmatprep.subr.bf16.mxu0 0
        %1391 = vmatpush1.bf16.msra.mxu0 0
        %1392 = vmatprep.subr.bf16.mxu0 0
        %1393 = vmatpush1.bf16.msra.mxu0 0
        %1394 = vmatprep.subr.bf16.mxu0 0
        %1395 = vmatpush1.bf16.msra.mxu0 0
        %1396 = vmatprep.subr.bf16.mxu0 0
        %1397 = vmatpush1.bf16.msra.mxu0 0
        %1398 = vmatprep.subr.bf16.mxu0 0
        %1399 = vmatpush1.bf16.msra.mxu0 0
        %1400 = vmatprep.subr.bf16.mxu0 0
        %1401 = vmatpush1.bf16.msra.mxu0 0
        %1402 = vmatprep.subr.bf16.mxu0 0
        %1403 = vmatpush1.bf16.msra.mxu0 0
        %1404 = vmatprep.subr.bf16.mxu0 0
        %1405 = vmatpush1.bf16.msra.mxu0 0
        %1406 = vmatprep.subr.bf16.mxu0 0
        %1407 = vmatpush1.bf16.msra.mxu0 0
        %1408 = vmatprep.subr.bf16.mxu0 0
        %1409 = vmatpush1.bf16.msra.mxu0 0
        %1410 = vmatprep.mubr.bf16.mxu0 0
        %1411 = vmatmul.mubr.bf16.gmra.mrb[0].mxu0 %v1372
        %v1412 = vpop.f32.mrb[0].mxu0
        %v1413 = vadd.f32 0.0, %v1412
        %v1414 = vpop.f32.mrb[0].mxu0
        %v1415 = vpop.f32.mrb[0].mxu0
        %v1416 = vpop.f32.mrb[0].mxu0
        %1417 = vdwg.mxu0
        %v1419 = vsel %vm1127, %v1368, 0
        %v1422 = vsel %vm1374, %v1112, 0
        %1424 = vmatprep.subr.bf16.mxu0 0
        %1425 = vmatpush1.bf16.msra.mxu0 %v1422
        %1426 = vmatprep.subr.bf16.mxu0 0
        %1427 = vmatpush1.bf16.msra.mxu0 0
        %1428 = vmatprep.subr.bf16.mxu0 0
        %1429 = vmatpush1.bf16.msra.mxu0 0
        %1430 = vmatprep.subr.bf16.mxu0 0
        %1431 = vmatpush1.bf16.msra.mxu0 0
        %1432 = vmatprep.subr.bf16.mxu0 0
        %1433 = vmatpush1.bf16.msra.mxu0 0
        %1434 = vmatprep.subr.bf16.mxu0 0
        %1435 = vmatpush1.bf16.msra.mxu0 0
        %1436 = vmatprep.subr.bf16.mxu0 0
        %1437 = vmatpush1.bf16.msra.mxu0 0
        %1438 = vmatprep.subr.bf16.mxu0 0
        %1439 = vmatpush1.bf16.msra.mxu0 0
        %1440 = vmatprep.subr.bf16.mxu0 0
        %1441 = vmatpush1.bf16.msra.mxu0 0
        %1442 = vmatprep.subr.bf16.mxu0 0
        %1443 = vmatpush1.bf16.msra.mxu0 0
        %1444 = vmatprep.subr.bf16.mxu0 0
        %1445 = vmatpush1.bf16.msra.mxu0 0
        %1446 = vmatprep.subr.bf16.mxu0 0
        %1447 = vmatpush1.bf16.msra.mxu0 0
        %1448 = vmatprep.subr.bf16.mxu0 0
        %1449 = vmatpush1.bf16.msra.mxu0 0
        %1450 = vmatprep.subr.bf16.mxu0 0
        %1451 = vmatpush1.bf16.msra.mxu0 0
        %1452 = vmatprep.subr.bf16.mxu0 0
        %1453 = vmatpush1.bf16.msra.mxu0 0
        %1454 = vmatprep.subr.bf16.mxu0 0
        %1455 = vmatpush1.bf16.msra.mxu0 0
        %1456 = vmatprep.mubr.bf16.mxu0 0
        %1457 = vmatmul.mubr.bf16.gmra.mrb[0].mxu0 %v1419
        %v1458 = vpop.f32.mrb[0].mxu0
        %v1459 = vadd.f32 0.0, %v1458
        %v1460 = vpop.f32.mrb[0].mxu0
        %v1461 = vpop.f32.mrb[0].mxu0
        %v1462 = vpop.f32.mrb[0].mxu0
        %1463 = vdwg.mxu0
        %v1465 = vsel %vm1127, %v1369, 0
        %v1468 = vsel %vm1374, %v1115, 0
        %1470 = vmatprep.subr.bf16.mxu0 0
        %1471 = vmatpush1.bf16.msra.mxu0 %v1468
        %1472 = vmatprep.subr.bf16.mxu0 0
        %1473 = vmatpush1.bf16.msra.mxu0 0
        %1474 = vmatprep.subr.bf16.mxu0 0
        %1475 = vmatpush1.bf16.msra.mxu0 0
        %1476 = vmatprep.subr.bf16.mxu0 0
        %1477 = vmatpush1.bf16.msra.mxu0 0
        %1478 = vmatprep.subr.bf16.mxu0 0
        %1479 = vmatpush1.bf16.msra.mxu0 0
        %1480 = vmatprep.subr.bf16.mxu0 0
        %1481 = vmatpush1.bf16.msra.mxu0 0
        %1482 = vmatprep.subr.bf16.mxu0 0
        %1483 = vmatpush1.bf16.msra.mxu0 0
        %1484 = vmatprep.subr.bf16.mxu0 0
        %1485 = vmatpush1.bf16.msra.mxu0 0
        %1486 = vmatprep.subr.bf16.mxu0 0
        %1487 = vmatpush1.bf16.msra.mxu0 0
        %1488 = vmatprep.subr.bf16.mxu0 0
        %1489 = vmatpush1.bf16.msra.mxu0 0
        %1490 = vmatprep.subr.bf16.mxu0 0
        %1491 = vmatpush1.bf16.msra.mxu0 0
        %1492 = vmatprep.subr.bf16.mxu0 0
        %1493 = vmatpush1.bf16.msra.mxu0 0
        %1494 = vmatprep.subr.bf16.mxu0 0
        %1495 = vmatpush1.bf16.msra.mxu0 0
        %1496 = vmatprep.subr.bf16.mxu0 0
        %1497 = vmatpush1.bf16.msra.mxu0 0
        %1498 = vmatprep.subr.bf16.mxu0 0
        %1499 = vmatpush1.bf16.msra.mxu0 0
        %1500 = vmatprep.subr.bf16.mxu0 0
        %1501 = vmatpush1.bf16.msra.mxu0 0
        %1502 = vmatprep.mubr.bf16.mxu0 0
        %1503 = vmatmul.mubr.bf16.gmra.mrb[0].mxu0 %v1465
        %v1504 = vpop.f32.mrb[0].mxu0
        %v1505 = vadd.f32 0.0, %v1504
        %v1506 = vpop.f32.mrb[0].mxu0
        %v1507 = vpop.f32.mrb[0].mxu0
        %v1508 = vpop.f32.mrb[0].mxu0
        %1509 = vdwg.mxu0
        %v1511 = vsel %vm1127, %v1370, 0
        %v1514 = vsel %vm1374, %v1118, 0
        %1516 = vmatprep.subr.bf16.mxu0 0
        %1517 = vmatpush1.bf16.msra.mxu0 %v1514
        %1518 = vmatprep.subr.bf16.mxu0 0
        %1519 = vmatpush1.bf16.msra.mxu0 0
        %1520 = vmatprep.subr.bf16.mxu0 0
        %1521 = vmatpush1.bf16.msra.mxu0 0
        %1522 = vmatprep.subr.bf16.mxu0 0
        %1523 = vmatpush1.bf16.msra.mxu0 0
        %1524 = vmatprep.subr.bf16.mxu0 0
        %1525 = vmatpush1.bf16.msra.mxu0 0
        %1526 = vmatprep.subr.bf16.mxu0 0
        %1527 = vmatpush1.bf16.msra.mxu0 0
        %1528 = vmatprep.subr.bf16.mxu0 0
        %1529 = vmatpush1.bf16.msra.mxu0 0
        %1530 = vmatprep.subr.bf16.mxu0 0
        %1531 = vmatpush1.bf16.msra.mxu0 0
        %1532 = vmatprep.subr.bf16.mxu0 0
        %1533 = vmatpush1.bf16.msra.mxu0 0
        %1534 = vmatprep.subr.bf16.mxu0 0
        %1535 = vmatpush1.bf16.msra.mxu0 0
        %1536 = vmatprep.subr.bf16.mxu0 0
        %1537 = vmatpush1.bf16.msra.mxu0 0
        %1538 = vmatprep.subr.bf16.mxu0 0
        %1539 = vmatpush1.bf16.msra.mxu0 0
        %1540 = vmatprep.subr.bf16.mxu0 0
        %1541 = vmatpush1.bf16.msra.mxu0 0
        %1542 = vmatprep.subr.bf16.mxu0 0
        %1543 = vmatpush1.bf16.msra.mxu0 0
        %1544 = vmatprep.subr.bf16.mxu0 0
        %1545 = vmatpush1.bf16.msra.mxu0 0
        %1546 = vmatprep.subr.bf16.mxu0 0
        %1547 = vmatpush1.bf16.msra.mxu0 0
        %1548 = vmatprep.mubr.bf16.mxu0 0
        %1549 = vmatmul.mubr.bf16.gmra.mrb[0].mxu0 %v1511
        %v1550 = vpop.f32.mrb[0].mxu0
        %v1551 = vadd.f32 0.0, %v1550
        %v1552 = vpop.f32.mrb[0].mxu0
        %v1553 = vpop.f32.mrb[0].mxu0
        %v1554 = vpop.f32.mrb[0].mxu0
        %1555 = vdwg.mxu0
        %v1556 = vcombine.low %v1413, %v1505
        %v1557 = vcombine.high %v1413, %v1505
        %v1559 = vunpack.c.l.s4 1983009808
        %v1560 = vunpack.c.0.s8 %v1559
        %v1561 = vlaneseq
        %v1562 = vshrl.u32 %v1561, 7
        %v1563 = vsub.s32 %v1560, %v1562
        %v1564 = vrot.slane %v1556, %v1563
        %v1566 = vunpack.c.l.s4 1983009808
        %v1567 = vunpack.c.0.s8 %v1566
        %v1568 = vlaneseq
        %v1569 = vshrl.u32 %v1568, 7
        %v1570 = vsub.s32 %v1567, %v1569
        %v1571 = vrot.slane %v1557, %v1570
        %v1572 = vcombine.low %v1459, %v1551
        %v1573 = vcombine.high %v1459, %v1551
        %v1575 = vunpack.c.l.s4 1983009808
        %v1576 = vunpack.c.0.s8 %v1575
        %v1577 = vlaneseq
        %v1578 = vshrl.u32 %v1577, 7
        %v1579 = vsub.s32 %v1576, %v1578
        %v1580 = vrot.slane %v1572, %v1579
        %v1582 = vunpack.c.l.s4 1983009808
        %v1583 = vunpack.c.0.s8 %v1582
        %v1584 = vlaneseq
        %v1585 = vshrl.u32 %v1584, 7
        %v1586 = vsub.s32 %v1583, %v1585
        %v1587 = vrot.slane %v1573, %v1586
        %v1588 = vcombine.low %v1564, %v1580
        %v1589 = vcombine.high %v1564, %v1580
        %v1591 = vunpack.c.l.s4 1934713408
        %v1592 = vunpack.c.0.s8 %v1591
        %v1593 = vlaneseq
        %v1594 = vshrl.u32 %v1593, 7
        %v1595 = vsub.s32 %v1592, %v1594
        %v1596 = vrot.slane %v1588, %v1595
        %v1598 = vunpack.c.l.s4 1934713408
        %v1599 = vunpack.c.0.s8 %v1598
        %v1600 = vlaneseq
        %v1601 = vshrl.u32 %v1600, 7
        %v1602 = vsub.s32 %v1599, %v1601
        %v1603 = vrot.slane %v1589, %v1602
        %v1604 = vcombine.low %v1571, %v1587
        %v1605 = vcombine.high %v1571, %v1587
        %v1607 = vunpack.c.l.s4 1934713408
        %v1608 = vunpack.c.0.s8 %v1607
        %v1609 = vlaneseq
        %v1610 = vshrl.u32 %v1609, 7
        %v1611 = vsub.s32 %v1608, %v1610
        %v1612 = vrot.slane %v1604, %v1611
        %v1614 = vunpack.c.l.s4 1934713408
        %v1615 = vunpack.c.0.s8 %v1614
        %v1616 = vlaneseq
        %v1617 = vshrl.u32 %v1616, 7
        %v1618 = vsub.s32 %v1615, %v1617
        %v1619 = vrot.slane %v1605, %v1618
        %v1620 = vcombine.high %v1596, 0.0
        %v1621 = vcombine.high %v1603, 0.0
        %v1622 = vcombine.high %v1612, 0.0
        %v1623 = vcombine.high %v1619, 0.0
        %v1624 = vcombine.low %v1596, %v1603
        %v1626 = vunpack.c.l.s4 1983009808
        %v1627 = vunpack.c.0.s8 %v1626
        %v1628 = vlaneseq
        %v1629 = vshrl.u32 %v1628, 7
        %v1630 = vsub.s32 %v1627, %v1629
        %v1631 = vrot.slane %v1624, %v1630
        %v1632 = vcombine.low %v1620, %v1621
        %v1634 = vunpack.c.l.s4 1983009808
        %v1635 = vunpack.c.0.s8 %v1634
        %v1636 = vlaneseq
        %v1637 = vshrl.u32 %v1636, 7
        %v1638 = vsub.s32 %v1635, %v1637
        %v1639 = vrot.slane %v1632, %v1638
        %v1640 = vcombine.low %v1612, %v1619
        %v1642 = vunpack.c.l.s4 1983009808
        %v1643 = vunpack.c.0.s8 %v1642
        %v1644 = vlaneseq
        %v1645 = vshrl.u32 %v1644, 7
        %v1646 = vsub.s32 %v1643, %v1645
        %v1647 = vrot.slane %v1640, %v1646
        %v1648 = vcombine.low %v1622, %v1623
        %v1650 = vunpack.c.l.s4 1983009808
        %v1651 = vunpack.c.0.s8 %v1650
        %v1652 = vlaneseq
        %v1653 = vshrl.u32 %v1652, 7
        %v1654 = vsub.s32 %v1651, %v1653
        %v1655 = vrot.slane %v1648, %v1654
        %v1656 = vcombine.low %v1631, %v1639
        %v1657 = vcombine.high %v1631, %v1639
        %v1659 = vunpack.c.l.s4 1934713408
        %v1660 = vunpack.c.0.s8 %v1659
        %v1661 = vlaneseq
        %v1662 = vshrl.u32 %v1661, 7
        %v1663 = vsub.s32 %v1660, %v1662
        %v1664 = vrot.slane %v1656, %v1663
        %v1666 = vunpack.c.l.s4 1934713408
        %v1667 = vunpack.c.0.s8 %v1666
        %v1668 = vlaneseq
        %v1669 = vshrl.u32 %v1668, 7
        %v1670 = vsub.s32 %v1667, %v1669
        %v1671 = vrot.slane %v1657, %v1670
        %v1672 = vcombine.low %v1647, %v1655
        %v1673 = vcombine.high %v1647, %v1655
        %v1675 = vunpack.c.l.s4 1934713408
        %v1676 = vunpack.c.0.s8 %v1675
        %v1677 = vlaneseq
        %v1678 = vshrl.u32 %v1677, 7
        %v1679 = vsub.s32 %v1676, %v1678
        %v1680 = vrot.slane %v1672, %v1679
        %v1682 = vunpack.c.l.s4 1934713408
        %v1683 = vunpack.c.0.s8 %v1682
        %v1684 = vlaneseq
        %v1685 = vshrl.u32 %v1684, 7
        %v1686 = vsub.s32 %v1683, %v1685
        %v1687 = vrot.slane %v1673, %v1686
        %v1688 = vcombine.low %v1664, %v1680
        %v1689 = vcombine.high %v1664, %v1680
        %v1690 = vcombine.low %v1671, %v1687
        %v1691 = vcombine.high %v1671, %v1687
        %1693 = vrot.lane.b32.xlu0 %v1689, 8
        %v1694 = vpop.permute.xlu0 %1693
        %1697 = vrot.lane.b32.xlu0 %v1690, 16
        %v1698 = vpop.permute.xlu0 %1697
        %1701 = vrot.lane.b32.xlu0 %v1691, 24
        %v1702 = vpop.permute.xlu0 %1701
        %v1704 = vsel %vm1127, %v1688, %v1694
        %vm1705 = vcmask 130048
        %v1706 = vsel %vm1705, %v1704, %v1698
        %vm1707 = vcmask 195584
        %v1708 = vsel %vm1707, %v1706, %v1702
        %v1709 = vpack.c.bf16 %v1708, %v1708
        %v1710 = vld [vmem:[%s509] sm:$0xf]
        %v1711 = vld [vmem:[%s509 + $0x4] sm:$0xf]
        %v1712 = vld [vmem:[%s509 + $0x8] sm:$0xf]
        %v1713 = vld [vmem:[%s509 + $0xc] sm:$0xf]
        %v1718 = vunpack.c.l.b16 %v1710
        %v1719 = vunpack.c.l.b16 %v1711
        %v1720 = vunpack.c.l.b16 %v1712
        %v1721 = vunpack.c.l.b16 %v1713
        %v1722 = vpack.c.b16 %v1719, %v1718
        %v1723 = vpack.c.b16 %v1721, %v1720
        %v1727 = vsel %vm534, %v1709, 0
        %1729 = vmatprep.subr.bf16.mxu0 0
        %1730 = vmatpush1.bf16.msra.mxu0 %v1722
        %1731 = vmatprep.subr.bf16.mxu0 0
        %1732 = vmatpush1.bf16.msra.mxu0 %v1723
        %1733 = vmatprep.subr.bf16.mxu0 0
        %1734 = vmatpush1.bf16.msra.mxu0 0
        %1735 = vmatprep.subr.bf16.mxu0 0
        %1736 = vmatpush1.bf16.msra.mxu0 0
        %1737 = vmatprep.subr.bf16.mxu0 0
        %1738 = vmatpush1.bf16.msra.mxu0 0
        %1739 = vmatprep.subr.bf16.mxu0 0
        %1740 = vmatpush1.bf16.msra.mxu0 0
        %1741 = vmatprep.subr.bf16.mxu0 0
        %1742 = vmatpush1.bf16.msra.mxu0 0
        %1743 = vmatprep.subr.bf16.mxu0 0
        %1744 = vmatpush1.bf16.msra.mxu0 0
        %1745 = vmatprep.subr.bf16.mxu0 0
        %1746 = vmatpush1.bf16.msra.mxu0 0
        %1747 = vmatprep.subr.bf16.mxu0 0
        %1748 = vmatpush1.bf16.msra.mxu0 0
        %1749 = vmatprep.subr.bf16.mxu0 0
        %1750 = vmatpush1.bf16.msra.mxu0 0
        %1751 = vmatprep.subr.bf16.mxu0 0
        %1752 = vmatpush1.bf16.msra.mxu0 0
        %1753 = vmatprep.subr.bf16.mxu0 0
        %1754 = vmatpush1.bf16.msra.mxu0 0
        %1755 = vmatprep.subr.bf16.mxu0 0
        %1756 = vmatpush1.bf16.msra.mxu0 0
        %1757 = vmatprep.subr.bf16.mxu0 0
        %1758 = vmatpush1.bf16.msra.mxu0 0
        %1759 = vmatprep.subr.bf16.mxu0 0
        %1760 = vmatpush1.bf16.msra.mxu0 0
        %1761 = vmatprep.mubr.bf16.mxu0 0
        %1762 = vmatmul.mubr.bf16.gmra.mrb[0].mxu0 %v1727
        %v1763 = vpop.f32.mrb[0].mxu0
        %v1764 = vadd.f32 0.0, %v1763
        %v1765 = vpop.f32.mrb[0].mxu0
        %v1766 = vpop.f32.mrb[0].mxu0
        %v1767 = vpop.f32.mrb[0].mxu0
        %1768 = vdwg.mxu0
        %v1769 = vadd.f32 %v531, %v1764
        %v1770 = vld [vmem:[%s512] sm:$0x1]
        %v1771 = vmul.f32 %v1769, %v1769
        %v1772 = vsel %vm534, %v1771, 0.0
        %1773 = vadd.xlane.f32.xlu0 %v1772
        %v1774 = vpop.xlane.xlu0 %1773
        %v1775 = vmul.f32 %v1774, %v538
        %v1776 = vadd.f32 %v1775, 1e-06
        %v1777 = vrsqrt.pop %v1776
        %v1778 = vmul.f32 %v1769, %v1777
        %v1780 = vlaneseq
        %v1781 = vshrl.u32 %v1780, 7
        %v1782 = vsub.s32 0, %v1781
        %v1783 = vrot.slane %v1770, %v1782
        %v1785 = vmul.f32 %v1778, %v1783
        %v1786 = vpack.c.bf16 %v1785, %v1785
        %v1787 = vld [vmem:[%s517] sm:$0xf]
        %v1788 = vld [vmem:[%s517 + $0x4] sm:$0xf]
        %v1789 = vld [vmem:[%s517 + $0x8] sm:$0xf]
        %v1790 = vld [vmem:[%s517 + $0xc] sm:$0xf]
        %v1795 = vunpack.c.l.b16 %v1787
        %v1796 = vunpack.c.l.b16 %v1788
        %v1797 = vunpack.c.l.b16 %v1789
        %v1798 = vunpack.c.l.b16 %v1790
        %v1799 = vpack.c.b16 %v1796, %v1795
        %v1800 = vpack.c.b16 %v1798, %v1797
        %v1804 = vsel %vm534, %v1786, 0
        %1806 = vmatprep.subr.bf16.mxu0 0
        %1807 = vmatpush1.bf16.msra.mxu0 %v1799
        %1808 = vmatprep.subr.bf16.mxu0 0
        %1809 = vmatpush1.bf16.msra.mxu0 %v1800
        %1810 = vmatprep.subr.bf16.mxu0 0
        %1811 = vmatpush1.bf16.msra.mxu0 0
        %1812 = vmatprep.subr.bf16.mxu0 0
        %1813 = vmatpush1.bf16.msra.mxu0 0
        %1814 = vmatprep.subr.bf16.mxu0 0
        %1815 = vmatpush1.bf16.msra.mxu0 0
        %1816 = vmatprep.subr.bf16.mxu0 0
        %1817 = vmatpush1.bf16.msra.mxu0 0
        %1818 = vmatprep.subr.bf16.mxu0 0
        %1819 = vmatpush1.bf16.msra.mxu0 0
        %1820 = vmatprep.subr.bf16.mxu0 0
        %1821 = vmatpush1.bf16.msra.mxu0 0
        %1822 = vmatprep.subr.bf16.mxu0 0
        %1823 = vmatpush1.bf16.msra.mxu0 0
        %1824 = vmatprep.subr.bf16.mxu0 0
        %1825 = vmatpush1.bf16.msra.mxu0 0
        %1826 = vmatprep.subr.bf16.mxu0 0
        %1827 = vmatpush1.bf16.msra.mxu0 0
        %1828 = vmatprep.subr.bf16.mxu0 0
        %1829 = vmatpush1.bf16.msra.mxu0 0
        %1830 = vmatprep.subr.bf16.mxu0 0
        %1831 = vmatpush1.bf16.msra.mxu0 0
        %1832 = vmatprep.subr.bf16.mxu0 0
        %1833 = vmatpush1.bf16.msra.mxu0 0
        %1834 = vmatprep.subr.bf16.mxu0 0
        %1835 = vmatpush1.bf16.msra.mxu0 0
        %1836 = vmatprep.subr.bf16.mxu0 0
        %1837 = vmatpush1.bf16.msra.mxu0 0
        %1838 = vmatprep.mubr.bf16.mxu0 0
        %1839 = vmatmul.mubr.bf16.gmra.mrb[0].mxu0 %v1804
        %v1840 = vpop.f32.mrb[0].mxu0
        %v1841 = vadd.f32 0.0, %v1840
        %v1842 = vpop.f32.mrb[0].mxu0
        %v1843 = vpop.f32.mrb[0].mxu0
        %v1844 = vpop.f32.mrb[0].mxu0
        %1845 = vdwg.mxu0
        %v1846 = vmax.f32 %v1841, 0.0
        %v1847 = vpack.c.bf16 %v1846, %v1846
        %v1848 = vld [vmem:[%s522] sm:$0xf]
        %v1849 = vld [vmem:[%s522 + $0x4] sm:$0xf]
        %v1850 = vld [vmem:[%s522 + $0x8] sm:$0xf]
        %v1851 = vld [vmem:[%s522 + $0xc] sm:$0xf]
        %v1852 = vld [vmem:[%s522 + $0x10] sm:$0xf]
        %v1853 = vld [vmem:[%s522 + $0x14] sm:$0xf]
        %v1854 = vld [vmem:[%s522 + $0x18] sm:$0xf]
        %v1855 = vld [vmem:[%s522 + $0x1c] sm:$0xf]
        %v1864 = vunpack.c.l.b16 %v1848
        %v1865 = vunpack.c.l.b16 %v1849
        %v1866 = vunpack.c.l.b16 %v1850
        %v1867 = vunpack.c.l.b16 %v1851
        %v1868 = vunpack.c.l.b16 %v1852
        %v1869 = vunpack.c.l.b16 %v1853
        %v1870 = vunpack.c.l.b16 %v1854
        %v1871 = vunpack.c.l.b16 %v1855
        %v1872 = vpack.c.b16 %v1865, %v1864
        %v1873 = vpack.c.b16 %v1867, %v1866
        %v1874 = vpack.c.b16 %v1869, %v1868
        %v1875 = vpack.c.b16 %v1871, %v1870
        %vm1880 = vcmask 523264
        %v1882 = vsel %vm1880, %v1847, 0
        %1884 = vmatprep.subr.bf16.mxu0 0
        %1885 = vmatpush1.bf16.msra.mxu0 %v1872
        %1886 = vmatprep.subr.bf16.mxu0 0
        %1887 = vmatpush1.bf16.msra.mxu0 %v1873
        %1888 = vmatprep.subr.bf16.mxu0 0
        %1889 = vmatpush1.bf16.msra.mxu0 %v1874
        %1890 = vmatprep.subr.bf16.mxu0 0
        %1891 = vmatpush1.bf16.msra.mxu0 %v1875
        %1892 = vmatprep.subr.bf16.mxu0 0
        %1893 = vmatpush1.bf16.msra.mxu0 0
        %1894 = vmatprep.subr.bf16.mxu0 0
        %1895 = vmatpush1.bf16.msra.mxu0 0
        %1896 = vmatprep.subr.bf16.mxu0 0
        %1897 = vmatpush1.bf16.msra.mxu0 0
        %1898 = vmatprep.subr.bf16.mxu0 0
        %1899 = vmatpush1.bf16.msra.mxu0 0
        %1900 = vmatprep.subr.bf16.mxu0 0
        %1901 = vmatpush1.bf16.msra.mxu0 0
        %1902 = vmatprep.subr.bf16.mxu0 0
        %1903 = vmatpush1.bf16.msra.mxu0 0
        %1904 = vmatprep.subr.bf16.mxu0 0
        %1905 = vmatpush1.bf16.msra.mxu0 0
        %1906 = vmatprep.subr.bf16.mxu0 0
        %1907 = vmatpush1.bf16.msra.mxu0 0
        %1908 = vmatprep.subr.bf16.mxu0 0
        %1909 = vmatpush1.bf16.msra.mxu0 0
        %1910 = vmatprep.subr.bf16.mxu0 0
        %1911 = vmatpush1.bf16.msra.mxu0 0
        %1912 = vmatprep.subr.bf16.mxu0 0
        %1913 = vmatpush1.bf16.msra.mxu0 0
        %1914 = vmatprep.subr.bf16.mxu0 0
        %1915 = vmatpush1.bf16.msra.mxu0 0
        %1916 = vmatprep.mubr.bf16.mxu0 0
        %1917 = vmatmul.mubr.bf16.gmra.mrb[0].mxu0 %v1882
        %v1918 = vpop.f32.mrb[0].mxu0
        %v1919 = vadd.f32 0.0, %v1918
        %v1920 = vpop.f32.mrb[0].mxu0
        %v1921 = vpop.f32.mrb[0].mxu0
        %v1922 = vpop.f32.mrb[0].mxu0
        %1923 = vdwg.mxu0
        %v1924 = vadd.f32 %v1769, %v1919
        %1925 = vst.msk [vmem:[#allocation2] sm:$0xff] %vm534, %v1924
        %p1926 = scmp.eq.s32.totalorder %s33, 1
        // Predicated region
        $region73: #{tpu_custom_call.1} parent=59 // pred_check
          %p1927 = pneg %p1926
        $region74: #{tpu_custom_call.1} parent=59 // pred_check_branch
          %1929 = sbr.rel (%p1927) target = $region76
        $region75: #{tpu_custom_call.1} parent=59 // pred_region
          %v1930 = vld [vmem:[%s9] sm:$0x1]
          %v1931 = vmul.f32 %v1924, %v1924
          %v1932 = vsel %vm534, %v1931, 0.0
          %1933 = vadd.xlane.f32.xlu0 %v1932
          %v1934 = vpop.xlane.xlu0 %1933
          %v1935 = vmul.f32 %v1934, %v538
          %v1936 = vadd.f32 %v1935, 1e-06
          %v1937 = vrsqrt.pop %v1936
          %v1938 = vmul.f32 %v1924, %v1937
          %v1940 = vlaneseq
          %v1941 = vshrl.u32 %v1940, 7
          %v1942 = vsub.s32 0, %v1941
          %v1943 = vrot.slane %v1930, %v1942
          %v1945 = vmul.f32 %v1938, %v1943
          %v1946 = vsel %vm534, %v1945, 0.0
          %v1947 = vrot.slane %v1946, 4
          %v1948 = vadd.f32 %v1946, %v1947
          %v1949 = vrot.slane %v1948, 2
          %v1950 = vadd.f32 %v1948, %v1949
          %v1951 = vrot.slane %v1950, 1
          %v1952 = vadd.f32 %v1950, %v1951
          %vm1953 = vcmask 253952
          %1954 = vst.msk [vmem:[%s493] sm:$0x1] %vm1953, %v1952
        $region76: #{tpu_custom_call.1} parent=59 // pred_fallthru
          _
        %s1955 = sand.u32 %s298, 1
        %s1956 = scalar_lea.sflag [#allocation5], %s1955
        %s1957 = sand.u32 %s298, 1
        %s1958 = scalar_lea.vmem [#allocation8], %s1957
        // Predicated region
        $region77: #{tpu_custom_call.1} parent=59 // pred_check
          %p1959 = pneg %p308
        $region78: #{tpu_custom_call.1} parent=59 // pred_check_branch
          %1961 = sbr.rel (%p1959) target = $region80
        $region79: #{tpu_custom_call.1} parent=59 // pred_region
          %s1963 = ssub.s32 16, 16
          %1964 = vsyncadd %s1956, %s1963
          %s1965 = smul.addr %s32, 16
          %s1966 = scalar_lea.hbm %s10, %s1965
          %s1968 = sshll.u32 %s1958, 4
          %s1969 = int_to_ptr.vmem [resolvable:$true] %s1968
          %1971 = dma.vmem_to_hbm [thread:$0]  %s1969, 16, %s1966, %s1956
        $region80: #{tpu_custom_call.1} parent=59 // pred_fallthru
          _
      $region60: #{tpu_custom_call.1} parent=5 // pred_fallthru
        _
      %p1972 = scmp.le.s32.totalorder 2, %s23
      // Predicated region
      $region81: #{tpu_custom_call.1} parent=5 // pred_check
        %p1973 = pneg %p1972
      $region82: #{tpu_custom_call.1} parent=5 // pred_check_branch
        %1975 = sbr.rel (%p1973) target = $region84
      $region83: #{tpu_custom_call.1} parent=5 // pred_region
        %s1976 = ssub.s32 %s23, 2
        // Predicated region
        $region85: #{tpu_custom_call.1} parent=83 // pred_check
          %p1977 = pneg %p314
        $region86: #{tpu_custom_call.1} parent=83 // pred_check_branch
          %1979 = sbr.rel (%p1977) target = $region88
        $region87: #{tpu_custom_call.1} parent=83 // pred_region
          %s1980 = sand.u32 %s299, 1
          %s1981 = scalar_lea.sflag [#allocation5], %s1980
          %s1982 = sand.u32 %s299, 1
          %s1983 = scalar_lea.vmem [#allocation8], %s1982
          %1984 = dma.done %s1981, 16
        $region88: #{tpu_custom_call.1} parent=83 // pred_fallthru
          _
      $region84: #{tpu_custom_call.1} parent=5 // pred_fallthru
        _
    $region6: #{tpu_custom_call.1} parent=1 // loop_footer
      %s27 = sadd.s32 1, %s23
    $region7: #{tpu_custom_call.1} parent=1 // loop_footer_branch
      %22 = sbr.rel target = $region3
    $region8: #{tpu_custom_call.1} parent=1 // loop_exit
      _
    %1985 = vsyncpa [#allocation4], 1
    %s1986 = scalar_lea.sflag [#allocation4], 1
    %1987 = vsyncpa %s1986, 1
    %1988 = vsyncpa [#allocation7], 1
    %1989 = vsyncpa [#allocation5], 1
    %s1990 = scalar_lea.sflag [#allocation5], 1
    %1991 = vsyncpa %s1990, 1

</llo_original>
